<compile_context>
chip_gen: v5e
topology: v5e:2x2
jax: 0.10.0
libtpu: 0.0.40
codegen_flags: <defaults>
</compile_context>

<pallas_src>
import jax
import jax.numpy as jnp
from jax import lax
from jax.experimental import pallas as pl
from jax.experimental.pallas import tpu as pltpu

IN_DIM = 784                      # 28*28, fixed by the weight generator
HID = 64                          # generator hidden width
HID1 = HID + 1                    # hidden + folded-bias column
TGT_OUT = 8                       # target network: nn.Linear(784, 8)
N_W = TGT_OUT * IN_DIM            # 6272 generated weight entries
N_PARAMS = N_W + TGT_OUT          # 6280 params to estimate


def _twoup_fused_kernel(x_ref, w1_ref, b1_ref, w2w_ref, w2b_ref, out_ref):
    # ---- stage 1: weight generator on sample 0 only --------------------------------
    # propagate() consumes gen.view(-1)[:N_PARAMS] == row 0 of gen, so only x[0] matters.
    x0 = x_ref[0:1, :].astype(jnp.bfloat16)                                  # (1, 784)
    h0 = jnp.dot(x0, w1_ref[...], preferred_element_type=jnp.float32)       # (1, 64)
    h0 = jnp.maximum(h0 + b1_ref[...], 0.0)
    h0_aug = jnp.concatenate([h0, jnp.ones((1, 1), jnp.float32)], axis=1)   # (1, 65)

    # Block-diagonal H (8, 520): H[o, o*65:(o+1)*65] = h0_aug.  One M=8 MXU matmul
    # then produces every generated target-weight row plus its folded bias at once.
    hb = jnp.broadcast_to(h0_aug, (TGT_OUT, HID1))                          # (8, 65)
    row = lax.broadcasted_iota(jnp.int32, (TGT_OUT, HID1), 0)               # (8, 65)
    blocks = [jnp.where(row == o, hb, 0.0) for o in range(TGT_OUT)]
    H = jnp.concatenate(blocks, axis=1).astype(jnp.bfloat16)                # (8, 520)

    # Generated target weight (biases already folded in via the 65th column per block).
    w_tgt = jnp.dot(H, w2w_ref[...], preferred_element_type=jnp.float32)    # (8, 784)
    # Generated target bias (b2 tail folded into the 65th row of w2b).
    b_tgt = jnp.dot(h0_aug, w2b_ref[...],
                    preferred_element_type=jnp.float32)                     # (1, 8)

    # ---- stage 2: target Linear(784, 8) on the full batch with generated params ----
    # w_tgt is only ~7 f32 vregs, so the contracting-dim-1 form is cheap even if a
    # small XLU transpose is materialized.
    y = lax.dot_general(x_ref[...], w_tgt, (((1,), (1,)), ((), ())),
                        preferred_element_type=jnp.float32)                 # (B, 8)
    out_ref[...] = (y + b_tgt).astype(out_ref.dtype)


def _full(shape):
    # whole-array VMEM-resident block (total footprint here is ~0.9 MiB)
    return pl.BlockSpec(shape, lambda i: (0,) * len(shape))


def two_up_forward(x, prep):
    """TwoUp / HyperNet.propagate_forward(raw): generate target-network weights from
    raw (sample 0), then run the target Linear(784, 8) on raw with those weights."""
    B = x.shape[0]
    x2d = x.reshape(B, -1)                                # x.view(x.size(0), -1)
    flops = 2 * (IN_DIM * HID                             # generator hidden
                 + TGT_OUT * HID1 * IN_DIM                # generated weight matmul
                 + HID1 * TGT_OUT                         # generated bias
                 + B * IN_DIM * TGT_OUT)                  # target linear
    bytes_accessed = (B * IN_DIM * 4                      # x (f32)
                      + IN_DIM * HID * 2 + HID * 4        # w1 (bf16) + b1
                      + TGT_OUT * HID1 * IN_DIM * 2       # w2w (bf16)
                      + HID1 * TGT_OUT * 4                # w2b
                      + B * TGT_OUT * 4)                  # out
    return pl.pallas_call(
        _twoup_fused_kernel,
        out_shape=jax.ShapeDtypeStruct((B, TGT_OUT), jnp.float32),
        grid=(1,),
        in_specs=[_full((B, IN_DIM)),
                  _full((IN_DIM, HID)), _full((1, HID)),
                  _full((TGT_OUT * HID1, IN_DIM)), _full((HID1, TGT_OUT))],
        out_specs=_full((B, TGT_OUT)),
        compiler_params=pltpu.CompilerParams(dimension_semantics=("arbitrary",)),
        cost_estimate=pl.CostEstimate(flops=flops, transcendentals=0,
                                      bytes_accessed=bytes_accessed),
    )(x2d, prep["w1_t"], prep["b1_2d"], prep["w2w"], prep["w2b"])


def init_params(key):
    """PyTorch-convention parameters, nn.Linear default init U[-1/sqrt(fan_in), +]."""
    k1, k2, k3, k4 = jax.random.split(key, 4)
    bw1 = 1.0 / jnp.sqrt(IN_DIM)
    bw2 = 1.0 / jnp.sqrt(HID)
    return {
        "w1": jax.random.uniform(k1, (HID, IN_DIM), jnp.float32, -bw1, bw1),
        "b1": jax.random.uniform(k2, (HID,), jnp.float32, -bw1, bw1),
        "w2": jax.random.uniform(k3, (N_PARAMS, HID), jnp.float32, -bw2, bw2),
        "b2": jax.random.uniform(k4, (N_PARAMS,), jnp.float32, -bw2, bw2),
    }


def prepare_params(params):
    """One-time rearrangement of the PyTorch-convention params into kernel-native
    layouts (hoists every per-call transpose/reshape out of the hot path and folds the
    generated-weight / generated-bias adds into the matmul operands)."""
    w1, b1 = params["w1"], params["b1"]
    w2, b2 = params["w2"], params["b2"]
    # Block o (rows o*65 .. o*65+64) of w2w:
    #   rows 0..63 : w2w[o*65+h, i] = W2[o*784 + i, h]
    #   row  64    : w2w[o*65+64, i] = b2[o*784 + i]        (folded bias)
    w_blk = w2[:N_W].reshape(TGT_OUT, IN_DIM, HID).transpose(0, 2, 1)    # (8, 64, 784)
    b_blk = b2[:N_W].reshape(TGT_OUT, 1, IN_DIM)                         # (8, 1, 784)
    w2w = jnp.concatenate([w_blk, b_blk], axis=1).reshape(TGT_OUT * HID1, IN_DIM)
    # w2b[h, o] = W2[6272 + o, h] ; w2b[64, o] = b2[6272 + o]            (folded bias)
    w2b = jnp.concatenate([w2[N_W:].T, b2[N_W:][None, :]], axis=0)       # (65, 8)
    return {
        "w1_t":  w1.T.astype(jnp.bfloat16),           # (784, 64)  bf16: halve DMA bytes
        "b1_2d": b1[None, :].astype(jnp.float32),     # (1, 64)
        "w2w":   w2w.astype(jnp.bfloat16),            # (520, 784) bf16: dominant traffic
        "w2b":   w2b.astype(jnp.float32),             # (65, 8)    tiny, keep f32
    }


def reference_forward(x, params):
    """Pure-JAX f32 reference of the PyTorch module semantics."""
    B = x.shape[0]
    x2d = x.reshape(B, -1)
    h = jnp.maximum(x2d @ params["w1"].T + params["b1"], 0.0)
    gen = h @ params["w2"].T + params["b2"]
    pv = gen.reshape(-1)
    w_tgt = pv[:N_W].reshape(TGT_OUT, IN_DIM)
    b_tgt = pv[N_W:N_PARAMS]
    return x2d @ w_tgt.T + b_tgt


if __name__ == "__main__":
    key = jax.random.PRNGKey(0)
    kp, kx = jax.random.split(key)
    params = init_params(kp)
    prep = prepare_params(params)            # hoisted out of the per-call path

    B = 2
    x = jax.random.normal(kx, (B, 1, 28, 28), dtype=jnp.float32)   # raw input

    y = jax.block_until_ready(two_up_forward(x, prep))
    y_ref = reference_forward(x, params)

    assert y.shape == (B, TGT_OUT)
    # bf16 generator weights -> compare to the f32 reference at a scale-relative
    # tolerance (expected relative error of the generated weights is ~4e-3).
    err = float(jnp.max(jnp.abs(y - y_ref)))
    scale = float(jnp.max(jnp.abs(y_ref)))
    assert err <= 0.03 * scale + 1e-3, f"Pallas mismatch: max|err|={err:.4e}, scale={scale:.4e}"
    print("KERNEL_OK")
</pallas_src>

<mosaic_0001>
module attributes {stable_mosaic.version = 11 : i64} {
  func.func @_twoup_fused_kernel(%arg0: i32, %arg1: memref<2x784xf32, #tpu.memory_space<vmem>>, %arg2: memref<784x64xbf16, #tpu.memory_space<vmem>>, %arg3: memref<1x64xf32, #tpu.memory_space<vmem>>, %arg4: memref<520x784xbf16, #tpu.memory_space<vmem>>, %arg5: memref<65x8xf32, #tpu.memory_space<vmem>>, %arg6: memref<2x8xf32, #tpu.memory_space<vmem>>) attributes {dimension_semantics = [#tpu.dimension_semantics<arbitrary>], iteration_bounds = array<i64: 1>, scalar_prefetch = 0 : i64, scratch_operands = 0 : i64, tpu.core_type = #tpu.core_type<tc>, window_params = [{pipeline_mode = #tpu.pipeline_mode<synchronous>, transform_indices = @transform_0, window_bounds = array<i64: 2, 784>}, {pipeline_mode = #tpu.pipeline_mode<synchronous>, transform_indices = @transform_1, window_bounds = array<i64: 784, 64>}, {pipeline_mode = #tpu.pipeline_mode<synchronous>, transform_indices = @transform_2, window_bounds = array<i64: 1, 64>}, {pipeline_mode = #tpu.pipeline_mode<synchronous>, transform_indices = @transform_3, window_bounds = array<i64: 520, 784>}, {pipeline_mode = #tpu.pipeline_mode<synchronous>, transform_indices = @transform_4, window_bounds = array<i64: 65, 8>}, {pipeline_mode = #tpu.pipeline_mode<synchronous>, transform_indices = @transform_5, window_bounds = array<i64: 2, 8>}]} {
    %c0 = arith.constant 0 : index
    %c0_0 = arith.constant 0 : index
    %0 = vector.load %arg1[%c0, %c0_0] : memref<2x784xf32, #tpu.memory_space<vmem>>, vector<1x784xf32>
    %1 = arith.truncf %0 : vector<1x784xf32> to vector<1x784xbf16>
    %c0_1 = arith.constant 0 : index
    %c0_2 = arith.constant 0 : index
    %2 = vector.load %arg2[%c0_1, %c0_2] : memref<784x64xbf16, #tpu.memory_space<vmem>>, vector<784x64xbf16>
    %cst = arith.constant dense<0.000000e+00> : vector<1x64xf32>
    %3 = tpu.matmul %1, %2, %cst {dimension_numbers = #tpu.dot_dimension_numbers<[1], [0], [0], [1], [0, 0, 1, 1], [], []>} : vector<1x784xbf16>, vector<784x64xbf16>, vector<1x64xf32> -> vector<1x64xf32>
    %c0_3 = arith.constant 0 : index
    %c0_4 = arith.constant 0 : index
    %4 = vector.load %arg3[%c0_3, %c0_4] : memref<1x64xf32, #tpu.memory_space<vmem>>, vector<1x64xf32>
    %5 = arith.addf %3, %4 : vector<1x64xf32>
    %cst_5 = arith.constant 0.000000e+00 : f32
    %6 = vector.broadcast %cst_5 : f32 to vector<1x64xf32>
    %7 = arith.maximumf %5, %6 : vector<1x64xf32>
    %cst_6 = arith.constant 1.000000e+00 : f32
    %8 = vector.broadcast %cst_6 : f32 to vector<1x1xf32>
    %9 = tpu.concatenate %7, %8 in 1 : vector<1x64xf32>, vector<1x1xf32> -> vector<1x65xf32>
    %10 = vector.shape_cast %9 : vector<1x65xf32> to vector<1x65xf32>
    %11 = vector.broadcast %10 : vector<1x65xf32> to vector<8x65xf32>
    %12 = tpu.iota {dimensions = array<i32: 0>} : vector<8x65xi32>
    %c0_i32 = arith.constant 0 : i32
    %13 = vector.broadcast %c0_i32 : i32 to vector<8x65xi32>
    %14 = arith.cmpi eq, %12, %13 : vector<8x65xi32>
    %cst_7 = arith.constant 0.000000e+00 : f32
    %15 = vector.broadcast %cst_7 : f32 to vector<8x65xf32>
    %16 = arith.select %14, %11, %15 : vector<8x65xi1>, vector<8x65xf32>
    %c1_i32 = arith.constant 1 : i32
    %17 = vector.broadcast %c1_i32 : i32 to vector<8x65xi32>
    %18 = arith.cmpi eq, %12, %17 : vector<8x65xi32>
    %cst_8 = arith.constant 0.000000e+00 : f32
    %19 = vector.broadcast %cst_8 : f32 to vector<8x65xf32>
    %20 = arith.select %18, %11, %19 : vector<8x65xi1>, vector<8x65xf32>
    %c2_i32 = arith.constant 2 : i32
    %21 = vector.broadcast %c2_i32 : i32 to vector<8x65xi32>
    %22 = arith.cmpi eq, %12, %21 : vector<8x65xi32>
    %cst_9 = arith.constant 0.000000e+00 : f32
    %23 = vector.broadcast %cst_9 : f32 to vector<8x65xf32>
    %24 = arith.select %22, %11, %23 : vector<8x65xi1>, vector<8x65xf32>
    %c3_i32 = arith.constant 3 : i32
    %25 = vector.broadcast %c3_i32 : i32 to vector<8x65xi32>
    %26 = arith.cmpi eq, %12, %25 : vector<8x65xi32>
    %cst_10 = arith.constant 0.000000e+00 : f32
    %27 = vector.broadcast %cst_10 : f32 to vector<8x65xf32>
    %28 = arith.select %26, %11, %27 : vector<8x65xi1>, vector<8x65xf32>
    %c4_i32 = arith.constant 4 : i32
    %29 = vector.broadcast %c4_i32 : i32 to vector<8x65xi32>
    %30 = arith.cmpi eq, %12, %29 : vector<8x65xi32>
    %cst_11 = arith.constant 0.000000e+00 : f32
    %31 = vector.broadcast %cst_11 : f32 to vector<8x65xf32>
    %32 = arith.select %30, %11, %31 : vector<8x65xi1>, vector<8x65xf32>
    %c5_i32 = arith.constant 5 : i32
    %33 = vector.broadcast %c5_i32 : i32 to vector<8x65xi32>
    %34 = arith.cmpi eq, %12, %33 : vector<8x65xi32>
    %cst_12 = arith.constant 0.000000e+00 : f32
    %35 = vector.broadcast %cst_12 : f32 to vector<8x65xf32>
    %36 = arith.select %34, %11, %35 : vector<8x65xi1>, vector<8x65xf32>
    %c6_i32 = arith.constant 6 : i32
    %37 = vector.broadcast %c6_i32 : i32 to vector<8x65xi32>
    %38 = arith.cmpi eq, %12, %37 : vector<8x65xi32>
    %cst_13 = arith.constant 0.000000e+00 : f32
    %39 = vector.broadcast %cst_13 : f32 to vector<8x65xf32>
    %40 = arith.select %38, %11, %39 : vector<8x65xi1>, vector<8x65xf32>
    %c7_i32 = arith.constant 7 : i32
    %41 = vector.broadcast %c7_i32 : i32 to vector<8x65xi32>
    %42 = arith.cmpi eq, %12, %41 : vector<8x65xi32>
    %cst_14 = arith.constant 0.000000e+00 : f32
    %43 = vector.broadcast %cst_14 : f32 to vector<8x65xf32>
    %44 = arith.select %42, %11, %43 : vector<8x65xi1>, vector<8x65xf32>
    %45 = tpu.concatenate %16, %20, %24, %28, %32, %36, %40, %44 in 1 : vector<8x65xf32>, vector<8x65xf32>, vector<8x65xf32>, vector<8x65xf32>, vector<8x65xf32>, vector<8x65xf32>, vector<8x65xf32>, vector<8x65xf32> -> vector<8x520xf32>
    %46 = arith.truncf %45 : vector<8x520xf32> to vector<8x520xbf16>
    %c0_15 = arith.constant 0 : index
    %c0_16 = arith.constant 0 : index
    %47 = vector.load %arg4[%c0_15, %c0_16] : memref<520x784xbf16, #tpu.memory_space<vmem>>, vector<520x784xbf16>
    %cst_17 = arith.constant dense<0.000000e+00> : vector<8x784xf32>
    %48 = tpu.matmul %46, %47, %cst_17 {dimension_numbers = #tpu.dot_dimension_numbers<[1], [0], [0], [1], [0, 0, 1, 1], [], []>} : vector<8x520xbf16>, vector<520x784xbf16>, vector<8x784xf32> -> vector<8x784xf32>
    %c0_18 = arith.constant 0 : index
    %c0_19 = arith.constant 0 : index
    %49 = vector.load %arg5[%c0_18, %c0_19] : memref<65x8xf32, #tpu.memory_space<vmem>>, vector<65x8xf32>
    %cst_20 = arith.constant dense<0.000000e+00> : vector<1x8xf32>
    %50 = tpu.matmul %9, %49, %cst_20 {dimension_numbers = #tpu.dot_dimension_numbers<[1], [0], [0], [1], [0, 0, 1, 1], [], []>} : vector<1x65xf32>, vector<65x8xf32>, vector<1x8xf32> -> vector<1x8xf32>
    %c0_21 = arith.constant 0 : index
    %c0_22 = arith.constant 0 : index
    %51 = vector.load %arg1[%c0_21, %c0_22] : memref<2x784xf32, #tpu.memory_space<vmem>>, vector<2x784xf32>
    %cst_23 = arith.constant dense<0.000000e+00> : vector<2x8xf32>
    %52 = tpu.matmul %51, %48, %cst_23 {dimension_numbers = #tpu.dot_dimension_numbers<[1], [1], [0], [0], [0, 0, 1, 0], [], []>} : vector<2x784xf32>, vector<8x784xf32>, vector<2x8xf32> -> vector<2x8xf32>
    %53 = vector.broadcast %50 : vector<1x8xf32> to vector<2x8xf32>
    %54 = arith.addf %52, %53 : vector<2x8xf32>
    %c0_24 = arith.constant 0 : index
    %c0_25 = arith.constant 0 : index
    %55 = vector.load %arg6[%c0_24, %c0_25] : memref<2x8xf32, #tpu.memory_space<vmem>>, vector<2x8xf32>
    tpu.vector_store %arg6[%c0_24, %c0_25], %54 {strides = array<i32>} : memref<2x8xf32, #tpu.memory_space<vmem>>, vector<2x8xf32>,
    return
  }
  func.func @transform_0(%arg0: i32) -> (i32, i32) {
    %c0_i32 = arith.constant 0 : i32
    %c0_i32_0 = arith.constant 0 : i32
    %c0_i32_1 = arith.constant 0 : i32
    return %c0_i32, %c0_i32_0 : i32, i32
  }
  func.func @transform_1(%arg0: i32) -> (i32, i32) {
    %c0_i32 = arith.constant 0 : i32
    %c0_i32_0 = arith.constant 0 : i32
    %c0_i32_1 = arith.constant 0 : i32
    return %c0_i32, %c0_i32_0 : i32, i32
  }
  func.func @transform_2(%arg0: i32) -> (i32, i32) {
    %c0_i32 = arith.constant 0 : i32
    %c0_i32_0 = arith.constant 0 : i32
    %c0_i32_1 = arith.constant 0 : i32
    return %c0_i32, %c0_i32_0 : i32, i32
  }
  func.func @transform_3(%arg0: i32) -> (i32, i32) {
    %c0_i32 = arith.constant 0 : i32
    %c0_i32_0 = arith.constant 0 : i32
    %c0_i32_1 = arith.constant 0 : i32
    return %c0_i32, %c0_i32_0 : i32, i32
  }
  func.func @transform_4(%arg0: i32) -> (i32, i32) {
    %c0_i32 = arith.constant 0 : i32
    %c0_i32_0 = arith.constant 0 : i32
    %c0_i32_1 = arith.constant 0 : i32
    return %c0_i32, %c0_i32_0 : i32, i32
  }
  func.func @transform_5(%arg0: i32) -> (i32, i32) {
    %c0_i32 = arith.constant 0 : i32
    %c0_i32_0 = arith.constant 0 : i32
    %c0_i32_1 = arith.constant 0 : i32
    return %c0_i32, %c0_i32_0 : i32, i32
  }
}

</mosaic_0001>

<llo_original>
// kernel: tpu_custom_call.1
$region0: #{tpu_custom_call.1}
  #allocation0 [shape = 'u32[]', space=smem, size = 0x4, offset = 0x4, fixed_abs, tag = 'smem constant byte address 0x4 - core index']
  #allocation1 [shape = 'u32[72,128]{1,0:T(1,128)}', space=vmem, size = 0x9000, scoped, tag = 'internal scratch']
  %s0 = inlined_call_operand.vmem [shape: f32[2,784], index: 0, kind: input, shape index: {}]
  %s1 = inlined_call_operand.vmem [shape: bf16[784,64], index: 1, kind: input, shape index: {}]
  %s2 = inlined_call_operand.vmem [shape: f32[1,64], index: 2, kind: input, shape index: {}]
  %s3 = inlined_call_operand.hbm [shape: bf16[520,784], index: 3, kind: input, shape index: {}]
  %s4 = inlined_call_operand.vmem [shape: f32[65,8], index: 4, kind: input, shape index: {}]
  %s5 = inlined_call_operand.hbm [shape: f32[2,8], index: 5, kind: output, shape index: {}]
  %s6 = sld [smem:[#allocation0]]
  $region34: #{tpu_custom_call.1} parent=0
    _
  %s8 = ssub.s32 1, %s6
  %s9 = scalar_select 0, %s8, %s6
  $region1: #{tpu_custom_call.1} parent=0
    #allocation2 [shape = 'u8[931840]{0}', space=vmem, size = 0xe3800, scoped, tag = 'input window, operand 3, single buffered']
    #allocation3 [shape = 's32[1]{0}', space=sflag, size = 0x4, scoped, tag = 'scoped memory for tpu_custom_call.1']
    #allocation4 [shape = 's32[1]{0}', space=sflag, size = 0x4, scoped, tag = 'scoped memory for tpu_custom_call.1']
    #allocation5 [shape = 'u8[1024]{0}', space=vmem, size = 0x400, scoped, tag = 'output window, operand 0, single buffered']
    %10 = vsyncpa [#allocation3], 0
    %11 = vsyncpa [#allocation4], 0
    // Predicated region
    $region2: #{tpu_custom_call.1} parent=1 // pred_check
      _
    $region3: #{tpu_custom_call.1} parent=1 // pred_check_branch
      %13 = sbr.rel (0) target = $region5
    $region4: #{tpu_custom_call.1} parent=1 // pred_region
      _
    $region5: #{tpu_custom_call.1} parent=1 // pred_fallthru
      _
    // Predicated region
    $region6: #{tpu_custom_call.1} parent=1 // pred_check
      _
    $region7: #{tpu_custom_call.1} parent=1 // pred_check_branch
      %15 = sbr.rel (0) target = $region9
    $region8: #{tpu_custom_call.1} parent=1 // pred_region
      _
    $region9: #{tpu_custom_call.1} parent=1 // pred_fallthru
      _
    // Predicated region
    $region10: #{tpu_custom_call.1} parent=1 // pred_check
      _
    $region11: #{tpu_custom_call.1} parent=1 // pred_check_branch
      %17 = sbr.rel (0) target = $region13
    $region12: #{tpu_custom_call.1} parent=1 // pred_region
      _
    $region13: #{tpu_custom_call.1} parent=1 // pred_fallthru
      _
    // Predicated region
    $region14: #{tpu_custom_call.1} parent=1 // pred_check
      _
    $region15: #{tpu_custom_call.1} parent=1 // pred_check_branch
      %19 = sbr.rel (0) target = $region17
    $region16: #{tpu_custom_call.1} parent=1 // pred_region
      %21 = vsyncadd [#allocation3], 0
      %s22 = sshll.u32 %s3, 4
      %s23 = int_to_ptr.hbm [resolvable:$true] %s22
      %s24 = sshll.u32 [#allocation2], 4
      %s25 = int_to_ptr.vmem [resolvable:$true] %s24
      %30 = dma.hbm_to_vmem [thread:$0]  %s23, 29120, %s25, [#allocation3], 448, 448, 28
    $region17: #{tpu_custom_call.1} parent=1 // pred_fallthru
      _
    // Predicated region
    $region18: #{tpu_custom_call.1} parent=1 // pred_check
      _
    $region19: #{tpu_custom_call.1} parent=1 // pred_check_branch
      %32 = sbr.rel (0) target = $region21
    $region20: #{tpu_custom_call.1} parent=1 // pred_region
      _
    $region21: #{tpu_custom_call.1} parent=1 // pred_fallthru
      _
    // Predicated region
    $region22: #{tpu_custom_call.1} parent=1 // pred_check
      _
    $region23: #{tpu_custom_call.1} parent=1 // pred_check_branch
      %34 = sbr.rel (0) target = $region25
    $region24: #{tpu_custom_call.1} parent=1 // pred_region
      %36 = dma.done [#allocation3], 29120
    $region25: #{tpu_custom_call.1} parent=1 // pred_fallthru
      _
    %v38 = vld [vmem:[%s0] ss:$2 sm:$0x7f]
    %v40 = vperm.slane %v38, 0
    %v41 = vperm.slane %v38, 1
    %v42 = vperm.slane %v38, 2
    %v43 = vperm.slane %v38, 3
    %v44 = vperm.slane %v38, 4
    %v45 = vperm.slane %v38, 5
    %v46 = vperm.slane %v38, 6
    %v54 = vpack.c.bf16 %v40, %v40
    %v55 = vpack.c.bf16 %v41, %v41
    %v56 = vpack.c.bf16 %v42, %v42
    %v57 = vpack.c.bf16 %v43, %v43
    %v58 = vpack.c.bf16 %v44, %v44
    %v59 = vpack.c.bf16 %v45, %v45
    %v60 = vpack.c.bf16 %v46, %v46
    %v61 = vld [vmem:[%s1] sm:$0xf]
    %v62 = vld [vmem:[%s1 + $0x4] sm:$0xf]
    %v63 = vld [vmem:[%s1 + $0x8] sm:$0xf]
    %v64 = vld [vmem:[%s1 + $0xc] sm:$0xf]
    %v65 = vld [vmem:[%s1 + $0x10] sm:$0xf]
    %v66 = vld [vmem:[%s1 + $0x14] sm:$0xf]
    %v67 = vld [vmem:[%s1 + $0x18] sm:$0xf]
    %v68 = vld [vmem:[%s1 + $0x1c] sm:$0xf]
    %v69 = vld [vmem:[%s1 + $0x20] sm:$0xf]
    %v70 = vld [vmem:[%s1 + $0x24] sm:$0xf]
    %v71 = vld [vmem:[%s1 + $0x28] sm:$0xf]
    %v72 = vld [vmem:[%s1 + $0x2c] sm:$0xf]
    %v73 = vld [vmem:[%s1 + $0x30] sm:$0xf]
    %v74 = vld [vmem:[%s1 + $0x34] sm:$0xf]
    %v75 = vld [vmem:[%s1 + $0x38] sm:$0xf]
    %v76 = vld [vmem:[%s1 + $0x3c] sm:$0xf]
    %v77 = vld [vmem:[%s1 + $0x40] sm:$0xf]
    %v78 = vld [vmem:[%s1 + $0x44] sm:$0xf]
    %v79 = vld [vmem:[%s1 + $0x48] sm:$0xf]
    %v80 = vld [vmem:[%s1 + $0x4c] sm:$0xf]
    %v81 = vld [vmem:[%s1 + $0x50] sm:$0xf]
    %v82 = vld [vmem:[%s1 + $0x54] sm:$0xf]
    %v83 = vld [vmem:[%s1 + $0x58] sm:$0xf]
    %v84 = vld [vmem:[%s1 + $0x5c] sm:$0xf]
    %v85 = vld [vmem:[%s1 + $0x60] sm:$0xf]
    %v86 = vld [vmem:[%s1 + $0x64] sm:$0xf]
    %v87 = vld [vmem:[%s1 + $0x68] sm:$0xf]
    %v88 = vld [vmem:[%s1 + $0x6c] sm:$0xf]
    %v89 = vld [vmem:[%s1 + $0x70] sm:$0xf]
    %v90 = vld [vmem:[%s1 + $0x74] sm:$0xf]
    %v91 = vld [vmem:[%s1 + $0x78] sm:$0xf]
    %v92 = vld [vmem:[%s1 + $0x7c] sm:$0xf]
    %v93 = vld [vmem:[%s1 + $0x80] sm:$0xf]
    %v94 = vld [vmem:[%s1 + $0x84] sm:$0xf]
    %v95 = vld [vmem:[%s1 + $0x88] sm:$0xf]
    %v96 = vld [vmem:[%s1 + $0x8c] sm:$0xf]
    %v97 = vld [vmem:[%s1 + $0x90] sm:$0xf]
    %v98 = vld [vmem:[%s1 + $0x94] sm:$0xf]
    %v99 = vld [vmem:[%s1 + $0x98] sm:$0xf]
    %v100 = vld [vmem:[%s1 + $0x9c] sm:$0xf]
    %v101 = vld [vmem:[%s1 + $0xa0] sm:$0xf]
    %v102 = vld [vmem:[%s1 + $0xa4] sm:$0xf]
    %v103 = vld [vmem:[%s1 + $0xa8] sm:$0xf]
    %v104 = vld [vmem:[%s1 + $0xac] sm:$0xf]
    %v105 = vld [vmem:[%s1 + $0xb0] sm:$0xf]
    %v106 = vld [vmem:[%s1 + $0xb4] sm:$0xf]
    %v107 = vld [vmem:[%s1 + $0xb8] sm:$0xf]
    %v108 = vld [vmem:[%s1 + $0xbc] sm:$0xf]
    %v109 = vld [vmem:[%s1 + $0xc0] sm:$0xf]
    %v110 = vld [vmem:[%s1 + $0xc4] sm:$0xf]
    %v111 = vld [vmem:[%s1 + $0xc8] sm:$0xf]
    %v112 = vld [vmem:[%s1 + $0xcc] sm:$0xf]
    %v113 = vld [vmem:[%s1 + $0xd0] sm:$0xf]
    %v114 = vld [vmem:[%s1 + $0xd4] sm:$0xf]
    %v115 = vld [vmem:[%s1 + $0xd8] sm:$0xf]
    %v116 = vld [vmem:[%s1 + $0xdc] sm:$0xf]
    %v117 = vld [vmem:[%s1 + $0xe0] sm:$0xf]
    %v118 = vld [vmem:[%s1 + $0xe4] sm:$0xf]
    %v119 = vld [vmem:[%s1 + $0xe8] sm:$0xf]
    %v120 = vld [vmem:[%s1 + $0xec] sm:$0xf]
    %v121 = vld [vmem:[%s1 + $0xf0] sm:$0xf]
    %v122 = vld [vmem:[%s1 + $0xf4] sm:$0xf]
    %v123 = vld [vmem:[%s1 + $0xf8] sm:$0xf]
    %v124 = vld [vmem:[%s1 + $0xfc] sm:$0xf]
    %v125 = vld [vmem:[%s1 + $0x100] sm:$0xf]
    %v126 = vld [vmem:[%s1 + $0x104] sm:$0xf]
    %v127 = vld [vmem:[%s1 + $0x108] sm:$0xf]
    %v128 = vld [vmem:[%s1 + $0x10c] sm:$0xf]
    %v129 = vld [vmem:[%s1 + $0x110] sm:$0xf]
    %v130 = vld [vmem:[%s1 + $0x114] sm:$0xf]
    %v131 = vld [vmem:[%s1 + $0x118] sm:$0xf]
    %v132 = vld [vmem:[%s1 + $0x11c] sm:$0xf]
    %v133 = vld [vmem:[%s1 + $0x120] sm:$0xf]
    %v134 = vld [vmem:[%s1 + $0x124] sm:$0xf]
    %v135 = vld [vmem:[%s1 + $0x128] sm:$0xf]
    %v136 = vld [vmem:[%s1 + $0x12c] sm:$0xf]
    %v137 = vld [vmem:[%s1 + $0x130] sm:$0xf]
    %v138 = vld [vmem:[%s1 + $0x134] sm:$0xf]
    %v139 = vld [vmem:[%s1 + $0x138] sm:$0xf]
    %v140 = vld [vmem:[%s1 + $0x13c] sm:$0xf]
    %v141 = vld [vmem:[%s1 + $0x140] sm:$0xf]
    %v142 = vld [vmem:[%s1 + $0x144] sm:$0xf]
    %v143 = vld [vmem:[%s1 + $0x148] sm:$0xf]
    %v144 = vld [vmem:[%s1 + $0x14c] sm:$0xf]
    %v145 = vld [vmem:[%s1 + $0x150] sm:$0xf]
    %v146 = vld [vmem:[%s1 + $0x154] sm:$0xf]
    %v147 = vld [vmem:[%s1 + $0x158] sm:$0xf]
    %v148 = vld [vmem:[%s1 + $0x15c] sm:$0xf]
    %v149 = vld [vmem:[%s1 + $0x160] sm:$0xf]
    %v150 = vld [vmem:[%s1 + $0x164] sm:$0xf]
    %v151 = vld [vmem:[%s1 + $0x168] sm:$0xf]
    %v152 = vld [vmem:[%s1 + $0x16c] sm:$0xf]
    %v153 = vld [vmem:[%s1 + $0x170] sm:$0xf]
    %v154 = vld [vmem:[%s1 + $0x174] sm:$0xf]
    %v155 = vld [vmem:[%s1 + $0x178] sm:$0xf]
    %v156 = vld [vmem:[%s1 + $0x17c] sm:$0xf]
    %v157 = vld [vmem:[%s1 + $0x180] sm:$0xf]
    %v158 = vld [vmem:[%s1 + $0x184] sm:$0xf]
    %v159 = vld [vmem:[%s2] sm:$0x1]
    %v258 = vunpack.c.l.b16 %v61
    %v259 = vunpack.c.l.b16 %v62
    %v260 = vunpack.c.l.b16 %v63
    %v261 = vunpack.c.l.b16 %v64
    %v262 = vunpack.c.l.b16 %v65
    %v263 = vunpack.c.l.b16 %v66
    %v264 = vunpack.c.l.b16 %v67
    %v265 = vunpack.c.l.b16 %v68
    %v266 = vunpack.c.l.b16 %v69
    %v267 = vunpack.c.l.b16 %v70
    %v268 = vunpack.c.l.b16 %v71
    %v269 = vunpack.c.l.b16 %v72
    %v270 = vunpack.c.l.b16 %v73
    %v271 = vunpack.c.l.b16 %v74
    %v272 = vunpack.c.l.b16 %v75
    %v273 = vunpack.c.l.b16 %v76
    %v274 = vunpack.c.l.b16 %v77
    %v275 = vunpack.c.l.b16 %v78
    %v276 = vunpack.c.l.b16 %v79
    %v277 = vunpack.c.l.b16 %v80
    %v278 = vunpack.c.l.b16 %v81
    %v279 = vunpack.c.l.b16 %v82
    %v280 = vunpack.c.l.b16 %v83
    %v281 = vunpack.c.l.b16 %v84
    %v282 = vunpack.c.l.b16 %v85
    %v283 = vunpack.c.l.b16 %v86
    %v284 = vunpack.c.l.b16 %v87
    %v285 = vunpack.c.l.b16 %v88
    %v286 = vunpack.c.l.b16 %v89
    %v287 = vunpack.c.l.b16 %v90
    %v288 = vunpack.c.l.b16 %v91
    %v289 = vunpack.c.l.b16 %v92
    %v290 = vunpack.c.l.b16 %v93
    %v291 = vunpack.c.l.b16 %v94
    %v292 = vunpack.c.l.b16 %v95
    %v293 = vunpack.c.l.b16 %v96
    %v294 = vunpack.c.l.b16 %v97
    %v295 = vunpack.c.l.b16 %v98
    %v296 = vunpack.c.l.b16 %v99
    %v297 = vunpack.c.l.b16 %v100
    %v298 = vunpack.c.l.b16 %v101
    %v299 = vunpack.c.l.b16 %v102
    %v300 = vunpack.c.l.b16 %v103
    %v301 = vunpack.c.l.b16 %v104
    %v302 = vunpack.c.l.b16 %v105
    %v303 = vunpack.c.l.b16 %v106
    %v304 = vunpack.c.l.b16 %v107
    %v305 = vunpack.c.l.b16 %v108
    %v306 = vunpack.c.l.b16 %v109
    %v307 = vunpack.c.l.b16 %v110
    %v308 = vunpack.c.l.b16 %v111
    %v309 = vunpack.c.l.b16 %v112
    %v310 = vunpack.c.l.b16 %v113
    %v311 = vunpack.c.l.b16 %v114
    %v312 = vunpack.c.l.b16 %v115
    %v313 = vunpack.c.l.b16 %v116
    %v314 = vunpack.c.l.b16 %v117
    %v315 = vunpack.c.l.b16 %v118
    %v316 = vunpack.c.l.b16 %v119
    %v317 = vunpack.c.l.b16 %v120
    %v318 = vunpack.c.l.b16 %v121
    %v319 = vunpack.c.l.b16 %v122
    %v320 = vunpack.c.l.b16 %v123
    %v321 = vunpack.c.l.b16 %v124
    %v322 = vunpack.c.l.b16 %v125
    %v323 = vunpack.c.l.b16 %v126
    %v324 = vunpack.c.l.b16 %v127
    %v325 = vunpack.c.l.b16 %v128
    %v326 = vunpack.c.l.b16 %v129
    %v327 = vunpack.c.l.b16 %v130
    %v328 = vunpack.c.l.b16 %v131
    %v329 = vunpack.c.l.b16 %v132
    %v330 = vunpack.c.l.b16 %v133
    %v331 = vunpack.c.l.b16 %v134
    %v332 = vunpack.c.l.b16 %v135
    %v333 = vunpack.c.l.b16 %v136
    %v334 = vunpack.c.l.b16 %v137
    %v335 = vunpack.c.l.b16 %v138
    %v336 = vunpack.c.l.b16 %v139
    %v337 = vunpack.c.l.b16 %v140
    %v338 = vunpack.c.l.b16 %v141
    %v339 = vunpack.c.l.b16 %v142
    %v340 = vunpack.c.l.b16 %v143
    %v341 = vunpack.c.l.b16 %v144
    %v342 = vunpack.c.l.b16 %v145
    %v343 = vunpack.c.l.b16 %v146
    %v344 = vunpack.c.l.b16 %v147
    %v345 = vunpack.c.l.b16 %v148
    %v346 = vunpack.c.l.b16 %v149
    %v347 = vunpack.c.l.b16 %v150
    %v348 = vunpack.c.l.b16 %v151
    %v349 = vunpack.c.l.b16 %v152
    %v350 = vunpack.c.l.b16 %v153
    %v351 = vunpack.c.l.b16 %v154
    %v352 = vunpack.c.l.b16 %v155
    %v353 = vunpack.c.l.b16 %v156
    %v354 = vunpack.c.l.b16 %v157
    %v355 = vunpack.c.l.b16 %v158
    %v356 = vpack.c.b16 %v259, %v258
    %v357 = vpack.c.b16 %v261, %v260
    %v358 = vpack.c.b16 %v263, %v262
    %v359 = vpack.c.b16 %v265, %v264
    %v360 = vpack.c.b16 %v267, %v266
    %v361 = vpack.c.b16 %v269, %v268
    %v362 = vpack.c.b16 %v271, %v270
    %v363 = vpack.c.b16 %v273, %v272
    %v364 = vpack.c.b16 %v275, %v274
    %v365 = vpack.c.b16 %v277, %v276
    %v366 = vpack.c.b16 %v279, %v278
    %v367 = vpack.c.b16 %v281, %v280
    %v368 = vpack.c.b16 %v283, %v282
    %v369 = vpack.c.b16 %v285, %v284
    %v370 = vpack.c.b16 %v287, %v286
    %v371 = vpack.c.b16 %v289, %v288
    %v372 = vpack.c.b16 %v291, %v290
    %v373 = vpack.c.b16 %v293, %v292
    %v374 = vpack.c.b16 %v295, %v294
    %v375 = vpack.c.b16 %v297, %v296
    %v376 = vpack.c.b16 %v299, %v298
    %v377 = vpack.c.b16 %v301, %v300
    %v378 = vpack.c.b16 %v303, %v302
    %v379 = vpack.c.b16 %v305, %v304
    %v380 = vpack.c.b16 %v307, %v306
    %v381 = vpack.c.b16 %v309, %v308
    %v382 = vpack.c.b16 %v311, %v310
    %v383 = vpack.c.b16 %v313, %v312
    %v384 = vpack.c.b16 %v315, %v314
    %v385 = vpack.c.b16 %v317, %v316
    %v386 = vpack.c.b16 %v319, %v318
    %v387 = vpack.c.b16 %v321, %v320
    %v388 = vpack.c.b16 %v323, %v322
    %v389 = vpack.c.b16 %v325, %v324
    %v390 = vpack.c.b16 %v327, %v326
    %v391 = vpack.c.b16 %v329, %v328
    %v392 = vpack.c.b16 %v331, %v330
    %v393 = vpack.c.b16 %v333, %v332
    %v394 = vpack.c.b16 %v335, %v334
    %v395 = vpack.c.b16 %v337, %v336
    %v396 = vpack.c.b16 %v339, %v338
    %v397 = vpack.c.b16 %v341, %v340
    %v398 = vpack.c.b16 %v343, %v342
    %v399 = vpack.c.b16 %v345, %v344
    %v400 = vpack.c.b16 %v347, %v346
    %v401 = vpack.c.b16 %v349, %v348
    %v402 = vpack.c.b16 %v351, %v350
    %v403 = vpack.c.b16 %v353, %v352
    %v404 = vpack.c.b16 %v355, %v354
    %vm454 = vcmask 130048
    %v456 = vsel %vm454, %v60, 0
    %458 = vmatpush.bf16.msra.mxu0 %v363
    %459 = vmatpush.bf16.msra.mxu0 %v362
    %460 = vmatpush.bf16.msra.mxu0 %v361
    %461 = vmatpush.bf16.msra.mxu0 %v360
    %462 = vmatpush.bf16.msra.mxu0 %v359
    %463 = vmatpush.bf16.msra.mxu0 %v358
    %464 = vmatpush.bf16.msra.mxu0 %v357
    %465 = vmatpush.bf16.msra.mxu0 %v356
    %466 = vmatmul.bf16.gmra.mxu0 %v54
    %v467 = vpop.f32.mrf.mxu0
    %v468 = vadd.f32 %v159, %v467
    %v469 = vpop.f32.mrf.mxu0
    %470 = vdwg.mxu0
    %471 = vmatpush.bf16.msra.mxu0 %v371
    %472 = vmatpush.bf16.msra.mxu0 %v370
    %473 = vmatpush.bf16.msra.mxu0 %v369
    %474 = vmatpush.bf16.msra.mxu0 %v368
    %475 = vmatpush.bf16.msra.mxu0 %v367
    %476 = vmatpush.bf16.msra.mxu0 %v366
    %477 = vmatpush.bf16.msra.mxu0 %v365
    %478 = vmatpush.bf16.msra.mxu0 %v364
    %479 = vmatmul.bf16.gmra.mxu0 %v55
    %v480 = vpop.f32.mrf.mxu0
    %v481 = vadd.f32 %v468, %v480
    %v482 = vpop.f32.mrf.mxu0
    %483 = vdwg.mxu0
    %484 = vmatpush.bf16.msra.mxu0 %v379
    %485 = vmatpush.bf16.msra.mxu0 %v378
    %486 = vmatpush.bf16.msra.mxu0 %v377
    %487 = vmatpush.bf16.msra.mxu0 %v376
    %488 = vmatpush.bf16.msra.mxu0 %v375
    %489 = vmatpush.bf16.msra.mxu0 %v374
    %490 = vmatpush.bf16.msra.mxu0 %v373
    %491 = vmatpush.bf16.msra.mxu0 %v372
    %492 = vmatmul.bf16.gmra.mxu0 %v56
    %v493 = vpop.f32.mrf.mxu0
    %v494 = vadd.f32 %v481, %v493
    %v495 = vpop.f32.mrf.mxu0
    %496 = vdwg.mxu0
    %497 = vmatpush.bf16.msra.mxu0 %v387
    %498 = vmatpush.bf16.msra.mxu0 %v386
    %499 = vmatpush.bf16.msra.mxu0 %v385
    %500 = vmatpush.bf16.msra.mxu0 %v384
    %501 = vmatpush.bf16.msra.mxu0 %v383
    %502 = vmatpush.bf16.msra.mxu0 %v382
    %503 = vmatpush.bf16.msra.mxu0 %v381
    %504 = vmatpush.bf16.msra.mxu0 %v380
    %505 = vmatmul.bf16.gmra.mxu0 %v57
    %v506 = vpop.f32.mrf.mxu0
    %v507 = vadd.f32 %v494, %v506
    %v508 = vpop.f32.mrf.mxu0
    %509 = vdwg.mxu0
    %510 = vmatpush.bf16.msra.mxu0 %v395
    %511 = vmatpush.bf16.msra.mxu0 %v394
    %512 = vmatpush.bf16.msra.mxu0 %v393
    %513 = vmatpush.bf16.msra.mxu0 %v392
    %514 = vmatpush.bf16.msra.mxu0 %v391
    %515 = vmatpush.bf16.msra.mxu0 %v390
    %516 = vmatpush.bf16.msra.mxu0 %v389
    %517 = vmatpush.bf16.msra.mxu0 %v388
    %518 = vmatmul.bf16.gmra.mxu0 %v58
    %v519 = vpop.f32.mrf.mxu0
    %v520 = vadd.f32 %v507, %v519
    %v521 = vpop.f32.mrf.mxu0
    %522 = vdwg.mxu0
    %523 = vmatpush.bf16.msra.mxu0 %v403
    %524 = vmatpush.bf16.msra.mxu0 %v402
    %525 = vmatpush.bf16.msra.mxu0 %v401
    %526 = vmatpush.bf16.msra.mxu0 %v400
    %527 = vmatpush.bf16.msra.mxu0 %v399
    %528 = vmatpush.bf16.msra.mxu0 %v398
    %529 = vmatpush.bf16.msra.mxu0 %v397
    %530 = vmatpush.bf16.msra.mxu0 %v396
    %531 = vmatmul.bf16.gmra.mxu0 %v59
    %v532 = vpop.f32.mrf.mxu0
    %v533 = vadd.f32 %v520, %v532
    %v534 = vpop.f32.mrf.mxu0
    %535 = vdwg.mxu0
    %536 = vmatpush.bf16.msra.mxu0 0
    %537 = vmatpush.bf16.msra.mxu0 0
    %538 = vmatpush.bf16.msra.mxu0 0
    %539 = vmatpush.bf16.msra.mxu0 0
    %540 = vmatpush.bf16.msra.mxu0 0
    %541 = vmatpush.bf16.msra.mxu0 0
    %542 = vmatpush.bf16.msra.mxu0 0
    %543 = vmatpush.bf16.msra.mxu0 %v404
    %544 = vmatmul.bf16.gmra.mxu0 %v456
    %v545 = vpop.f32.mrf.mxu0
    %v546 = vadd.f32 %v533, %v545
    %v547 = vpop.f32.mrf.mxu0
    %548 = vdwg.mxu0
    %v549 = vmax.f32 %v546, 0.0
    %vm550 = vcmask 523264
    %v551 = vsel %vm550, %v549, 1.0
    %v552 = vperm.slane %v551, 0
    %v553 = vlaneseq
    %v554 = vshrl.u32 %v553, 7
    %vm555 = vcmp.eq.s32.totalorder %v554, 0
    %v556 = vsel %vm555, %v552, 0.0
    %vm557 = vcmp.eq.s32.totalorder %v554, 1
    %v558 = vsel %vm557, %v552, 0.0
    %vm559 = vcmp.eq.s32.totalorder %v554, 2
    %v560 = vsel %vm559, %v552, 0.0
    %vm561 = vcmp.eq.s32.totalorder %v554, 3
    %v562 = vsel %vm561, %v552, 0.0
    %vm563 = vcmp.eq.s32.totalorder %v554, 4
    %v564 = vsel %vm563, %v552, 0.0
    %vm565 = vcmp.eq.s32.totalorder %v554, 5
    %v566 = vsel %vm565, %v552, 0.0
    %vm567 = vcmp.eq.s32.totalorder %v554, 6
    %v568 = vsel %vm567, %v552, 0.0
    %vm569 = vcmp.eq.s32.totalorder %v554, 7
    %v570 = vsel %vm569, %v552, 0.0
    %572 = vrot.lane.b32.xlu0 %v558, 65
    %v573 = vpop.permute.xlu0 %572
    %576 = vrot.lane.b32.xlu0 %v560, 2
    %v577 = vpop.permute.xlu0 %576
    %580 = vrot.lane.b32.xlu0 %v562, 67
    %v581 = vpop.permute.xlu0 %580
    %584 = vrot.lane.b32.xlu0 %v564, 4
    %v585 = vpop.permute.xlu0 %584
    %588 = vrot.lane.b32.xlu0 %v566, 69
    %v589 = vpop.permute.xlu0 %588
    %592 = vrot.lane.b32.xlu0 %v568, 6
    %v593 = vpop.permute.xlu0 %592
    %596 = vrot.lane.b32.xlu0 %v570, 71
    %v597 = vpop.permute.xlu0 %596
    %vm599 = vcmask 531456
    %v600 = vsel %vm599, %v556, %v573
    %vm601 = vcmask 15360
    %v602 = vsel %vm601, %v573, %v577
    %vm603 = vcmask 547840
    %v604 = vsel %vm603, %v602, %v581
    %vm605 = vcmask 31744
    %v606 = vsel %vm605, %v581, %v585
    %vm607 = vcmask 564224
    %v608 = vsel %vm607, %v606, %v589
    %vm609 = vcmask 48128
    %v610 = vsel %vm609, %v589, %v593
    %vm611 = vcmask 580608
    %v612 = vsel %vm611, %v610, %v597
    %v613 = vpack.c.bf16 %v600, %v600
    %v614 = vpack.c.bf16 %v604, %v604
    %v615 = vpack.c.bf16 %v608, %v608
    %v616 = vpack.c.bf16 %v612, %v612
    %v617 = vpack.c.bf16 %v597, %v597
    %v618 = vld [vmem:[#allocation2] sm:$0xff]
    %v619 = vld [vmem:[#allocation2 + $0x8] sm:$0xff]
    %v620 = vld [vmem:[#allocation2 + $0x10] sm:$0xff]
    %v621 = vld [vmem:[#allocation2 + $0x18] sm:$0xf]
    %v622 = vld [vmem:[#allocation2 + $0x1c] sm:$0xff]
    %v623 = vld [vmem:[#allocation2 + $0x24] sm:$0xff]
    %v624 = vld [vmem:[#allocation2 + $0x2c] sm:$0xff]
    %v625 = vld [vmem:[#allocation2 + $0x34] sm:$0xf]
    %v626 = vld [vmem:[#allocation2 + $0x38] sm:$0xff]
    %v627 = vld [vmem:[#allocation2 + $0x40] sm:$0xff]
    %v628 = vld [vmem:[#allocation2 + $0x48] sm:$0xff]
    %v629 = vld [vmem:[#allocation2 + $0x50] sm:$0xf]
    %v630 = vld [vmem:[#allocation2 + $0x54] sm:$0xff]
    %v631 = vld [vmem:[#allocation2 + $0x5c] sm:$0xff]
    %v632 = vld [vmem:[#allocation2 + $0x64] sm:$0xff]
    %v633 = vld [vmem:[#allocation2 + $0x6c] sm:$0xf]
    %v634 = vld [vmem:[#allocation2 + $0x70] sm:$0xff]
    %v635 = vld [vmem:[#allocation2 + $0x78] sm:$0xff]
    %v636 = vld [vmem:[#allocation2 + $0x80] sm:$0xff]
    %v637 = vld [vmem:[#allocation2 + $0x88] sm:$0xf]
    %v638 = vld [vmem:[#allocation2 + $0x8c] sm:$0xff]
    %v639 = vld [vmem:[#allocation2 + $0x94] sm:$0xff]
    %v640 = vld [vmem:[#allocation2 + $0x9c] sm:$0xff]
    %v641 = vld [vmem:[#allocation2 + $0xa4] sm:$0xf]
    %v642 = vld [vmem:[#allocation2 + $0xa8] sm:$0xff]
    %v643 = vld [vmem:[#allocation2 + $0xb0] sm:$0xff]
    %v644 = vld [vmem:[#allocation2 + $0xb8] sm:$0xff]
    %v645 = vld [vmem:[#allocation2 + $0xc0] sm:$0xf]
    %v646 = vld [vmem:[#allocation2 + $0xc4] sm:$0xff]
    %v647 = vld [vmem:[#allocation2 + $0xcc] sm:$0xff]
    %v648 = vld [vmem:[#allocation2 + $0xd4] sm:$0xff]
    %v649 = vld [vmem:[#allocation2 + $0xdc] sm:$0xf]
    %v650 = vld [vmem:[#allocation2 + $0xe0] sm:$0xff]
    %v651 = vld [vmem:[#allocation2 + $0xe8] sm:$0xff]
    %v652 = vld [vmem:[#allocation2 + $0xf0] sm:$0xff]
    %v653 = vld [vmem:[#allocation2 + $0xf8] sm:$0xf]
    %v654 = vld [vmem:[#allocation2 + $0xfc] sm:$0xff]
    %v655 = vld [vmem:[#allocation2 + $0x104] sm:$0xff]
    %v656 = vld [vmem:[#allocation2 + $0x10c] sm:$0xff]
    %v657 = vld [vmem:[#allocation2 + $0x114] sm:$0xf]
    %v658 = vld [vmem:[#allocation2 + $0x118] sm:$0xff]
    %v659 = vld [vmem:[#allocation2 + $0x120] sm:$0xff]
    %v660 = vld [vmem:[#allocation2 + $0x128] sm:$0xff]
    %v661 = vld [vmem:[#allocation2 + $0x130] sm:$0xf]
    %v662 = vld [vmem:[#allocation2 + $0x134] sm:$0xff]
    %v663 = vld [vmem:[#allocation2 + $0x13c] sm:$0xff]
    %v664 = vld [vmem:[#allocation2 + $0x144] sm:$0xff]
    %v665 = vld [vmem:[#allocation2 + $0x14c] sm:$0xf]
    %v666 = vld [vmem:[#allocation2 + $0x150] sm:$0xff]
    %v667 = vld [vmem:[#allocation2 + $0x158] sm:$0xff]
    %v668 = vld [vmem:[#allocation2 + $0x160] sm:$0xff]
    %v669 = vld [vmem:[#allocation2 + $0x168] sm:$0xf]
    %v670 = vld [vmem:[#allocation2 + $0x16c] sm:$0xff]
    %v671 = vld [vmem:[#allocation2 + $0x174] sm:$0xff]
    %v672 = vld [vmem:[#allocation2 + $0x17c] sm:$0xff]
    %v673 = vld [vmem:[#allocation2 + $0x184] sm:$0xf]
    %v674 = vld [vmem:[#allocation2 + $0x188] sm:$0xff]
    %v675 = vld [vmem:[#allocation2 + $0x190] sm:$0xff]
    %v676 = vld [vmem:[#allocation2 + $0x198] sm:$0xff]
    %v677 = vld [vmem:[#allocation2 + $0x1a0] sm:$0xf]
    %v678 = vld [vmem:[#allocation2 + $0x1a4] sm:$0xff]
    %v679 = vld [vmem:[#allocation2 + $0x1ac] sm:$0xff]
    %v680 = vld [vmem:[#allocation2 + $0x1b4] sm:$0xff]
    %v681 = vld [vmem:[#allocation2 + $0x1bc] sm:$0xf]
    %v682 = vld [vmem:[#allocation2 + $0x1c0] sm:$0xff]
    %v683 = vld [vmem:[#allocation2 + $0x1c8] sm:$0xff]
    %v684 = vld [vmem:[#allocation2 + $0x1d0] sm:$0xff]
    %v685 = vld [vmem:[#allocation2 + $0x1d8] sm:$0xf]
    %v686 = vld [vmem:[#allocation2 + $0x1dc] sm:$0xff]
    %v687 = vld [vmem:[#allocation2 + $0x1e4] sm:$0xff]
    %v688 = vld [vmem:[#allocation2 + $0x1ec] sm:$0xff]
    %v689 = vld [vmem:[#allocation2 + $0x1f4] sm:$0xf]
    %v690 = vld [vmem:[#allocation2 + $0x1f8] sm:$0xff]
    %v691 = vld [vmem:[#allocation2 + $0x200] sm:$0xff]
    %v692 = vld [vmem:[#allocation2 + $0x208] sm:$0xff]
    %v693 = vld [vmem:[#allocation2 + $0x210] sm:$0xf]
    %v694 = vld [vmem:[#allocation2 + $0x214] sm:$0xff]
    %v695 = vld [vmem:[#allocation2 + $0x21c] sm:$0xff]
    %v696 = vld [vmem:[#allocation2 + $0x224] sm:$0xff]
    %v697 = vld [vmem:[#allocation2 + $0x22c] sm:$0xf]
    %v698 = vld [vmem:[#allocation2 + $0x230] sm:$0xff]
    %v699 = vld [vmem:[#allocation2 + $0x238] sm:$0xff]
    %v700 = vld [vmem:[#allocation2 + $0x240] sm:$0xff]
    %v701 = vld [vmem:[#allocation2 + $0x248] sm:$0xf]
    %v702 = vld [vmem:[#allocation2 + $0x24c] sm:$0xff]
    %v703 = vld [vmem:[#allocation2 + $0x254] sm:$0xff]
    %v704 = vld [vmem:[#allocation2 + $0x25c] sm:$0xff]
    %v705 = vld [vmem:[#allocation2 + $0x264] sm:$0xf]
    %v706 = vld [vmem:[#allocation2 + $0x268] sm:$0xff]
    %v707 = vld [vmem:[#allocation2 + $0x270] sm:$0xff]
    %v708 = vld [vmem:[#allocation2 + $0x278] sm:$0xff]
    %v709 = vld [vmem:[#allocation2 + $0x280] sm:$0xf]
    %v710 = vld [vmem:[#allocation2 + $0x284] sm:$0xff]
    %v711 = vld [vmem:[#allocation2 + $0x28c] sm:$0xff]
    %v712 = vld [vmem:[#allocation2 + $0x294] sm:$0xff]
    %v713 = vld [vmem:[#allocation2 + $0x29c] sm:$0xf]
    %v714 = vld [vmem:[#allocation2 + $0x2a0] sm:$0xff]
    %v715 = vld [vmem:[#allocation2 + $0x2a8] sm:$0xff]
    %v716 = vld [vmem:[#allocation2 + $0x2b0] sm:$0xff]
    %v717 = vld [vmem:[#allocation2 + $0x2b8] sm:$0xf]
    %v718 = vld [vmem:[#allocation2 + $0x2bc] sm:$0xff]
    %v719 = vld [vmem:[#allocation2 + $0x2c4] sm:$0xff]
    %v720 = vld [vmem:[#allocation2 + $0x2cc] sm:$0xff]
    %v721 = vld [vmem:[#allocation2 + $0x2d4] sm:$0xf]
    %v722 = vld [vmem:[#allocation2 + $0x2d8] sm:$0xff]
    %v723 = vld [vmem:[#allocation2 + $0x2e0] sm:$0xff]
    %v724 = vld [vmem:[#allocation2 + $0x2e8] sm:$0xff]
    %v725 = vld [vmem:[#allocation2 + $0x2f0] sm:$0xf]
    %v726 = vld [vmem:[#allocation2 + $0x2f4] sm:$0xff]
    %v727 = vld [vmem:[#allocation2 + $0x2fc] sm:$0xff]
    %v728 = vld [vmem:[#allocation2 + $0x304] sm:$0xff]
    %v729 = vld [vmem:[#allocation2 + $0x30c] sm:$0xf]
    %v730 = vld [vmem:[#allocation2 + $0x310] sm:$0xff]
    %v731 = vld [vmem:[#allocation2 + $0x318] sm:$0xff]
    %v732 = vld [vmem:[#allocation2 + $0x320] sm:$0xff]
    %v733 = vld [vmem:[#allocation2 + $0x328] sm:$0xf]
    %v734 = vld [vmem:[#allocation2 + $0x32c] sm:$0xff]
    %v735 = vld [vmem:[#allocation2 + $0x334] sm:$0xff]
    %v736 = vld [vmem:[#allocation2 + $0x33c] sm:$0xff]
    %v737 = vld [vmem:[#allocation2 + $0x344] sm:$0xf]
    %v738 = vld [vmem:[#allocation2 + $0x348] sm:$0xff]
    %v739 = vld [vmem:[#allocation2 + $0x350] sm:$0xff]
    %v740 = vld [vmem:[#allocation2 + $0x358] sm:$0xff]
    %v741 = vld [vmem:[#allocation2 + $0x360] sm:$0xf]
    %v742 = vld [vmem:[#allocation2 + $0x364] sm:$0xff]
    %v743 = vld [vmem:[#allocation2 + $0x36c] sm:$0xff]
    %v744 = vld [vmem:[#allocation2 + $0x374] sm:$0xff]
    %v745 = vld [vmem:[#allocation2 + $0x37c] sm:$0xf]
    %v746 = vld [vmem:[#allocation2 + $0x380] sm:$0xff]
    %v747 = vld [vmem:[#allocation2 + $0x388] sm:$0xff]
    %v748 = vld [vmem:[#allocation2 + $0x390] sm:$0xff]
    %v749 = vld [vmem:[#allocation2 + $0x398] sm:$0xf]
    %v750 = vld [vmem:[#allocation2 + $0x39c] sm:$0xff]
    %v751 = vld [vmem:[#allocation2 + $0x3a4] sm:$0xff]
    %v752 = vld [vmem:[#allocation2 + $0x3ac] sm:$0xff]
    %v753 = vld [vmem:[#allocation2 + $0x3b4] sm:$0xf]
    %v754 = vld [vmem:[#allocation2 + $0x3b8] sm:$0xff]
    %v755 = vld [vmem:[#allocation2 + $0x3c0] sm:$0xff]
    %v756 = vld [vmem:[#allocation2 + $0x3c8] sm:$0xff]
    %v757 = vld [vmem:[#allocation2 + $0x3d0] sm:$0xf]
    %v758 = vld [vmem:[#allocation2 + $0x3d4] sm:$0xff]
    %v759 = vld [vmem:[#allocation2 + $0x3dc] sm:$0xff]
    %v760 = vld [vmem:[#allocation2 + $0x3e4] sm:$0xff]
    %v761 = vld [vmem:[#allocation2 + $0x3ec] sm:$0xf]
    %v762 = vld [vmem:[#allocation2 + $0x3f0] sm:$0xff]
    %v763 = vld [vmem:[#allocation2 + $0x3f8] sm:$0xff]
    %v764 = vld [vmem:[#allocation2 + $0x400] sm:$0xff]
    %v765 = vld [vmem:[#allocation2 + $0x408] sm:$0xf]
    %v766 = vld [vmem:[#allocation2 + $0x40c] sm:$0xff]
    %v767 = vld [vmem:[#allocation2 + $0x414] sm:$0xff]
    %v768 = vld [vmem:[#allocation2 + $0x41c] sm:$0xff]
    %v769 = vld [vmem:[#allocation2 + $0x424] sm:$0xf]
    %v770 = vld [vmem:[#allocation2 + $0x428] sm:$0xff]
    %v771 = vld [vmem:[#allocation2 + $0x430] sm:$0xff]
    %v772 = vld [vmem:[#allocation2 + $0x438] sm:$0xff]
    %v773 = vld [vmem:[#allocation2 + $0x440] sm:$0xf]
    %v774 = vld [vmem:[#allocation2 + $0x444] sm:$0xff]
    %v775 = vld [vmem:[#allocation2 + $0x44c] sm:$0xff]
    %v776 = vld [vmem:[#allocation2 + $0x454] sm:$0xff]
    %v777 = vld [vmem:[#allocation2 + $0x45c] sm:$0xf]
    %v778 = vld [vmem:[#allocation2 + $0x460] sm:$0xff]
    %v779 = vld [vmem:[#allocation2 + $0x468] sm:$0xff]
    %v780 = vld [vmem:[#allocation2 + $0x470] sm:$0xff]
    %v781 = vld [vmem:[#allocation2 + $0x478] sm:$0xf]
    %v782 = vld [vmem:[#allocation2 + $0x47c] sm:$0xff]
    %v783 = vld [vmem:[#allocation2 + $0x484] sm:$0xff]
    %v784 = vld [vmem:[#allocation2 + $0x48c] sm:$0xff]
    %v785 = vld [vmem:[#allocation2 + $0x494] sm:$0xf]
    %v786 = vld [vmem:[#allocation2 + $0x498] sm:$0xff]
    %v787 = vld [vmem:[#allocation2 + $0x4a0] sm:$0xff]
    %v788 = vld [vmem:[#allocation2 + $0x4a8] sm:$0xff]
    %v789 = vld [vmem:[#allocation2 + $0x4b0] sm:$0xf]
    %v790 = vld [vmem:[#allocation2 + $0x4b4] sm:$0xff]
    %v791 = vld [vmem:[#allocation2 + $0x4bc] sm:$0xff]
    %v792 = vld [vmem:[#allocation2 + $0x4c4] sm:$0xff]
    %v793 = vld [vmem:[#allocation2 + $0x4cc] sm:$0xf]
    %v794 = vld [vmem:[#allocation2 + $0x4d0] sm:$0xff]
    %v795 = vld [vmem:[#allocation2 + $0x4d8] sm:$0xff]
    %v796 = vld [vmem:[#allocation2 + $0x4e0] sm:$0xff]
    %v797 = vld [vmem:[#allocation2 + $0x4e8] sm:$0xf]
    %v798 = vld [vmem:[#allocation2 + $0x4ec] sm:$0xff]
    %v799 = vld [vmem:[#allocation2 + $0x4f4] sm:$0xff]
    %v800 = vld [vmem:[#allocation2 + $0x4fc] sm:$0xff]
    %v801 = vld [vmem:[#allocation2 + $0x504] sm:$0xf]
    %v802 = vld [vmem:[#allocation2 + $0x508] sm:$0xff]
    %v803 = vld [vmem:[#allocation2 + $0x510] sm:$0xff]
    %v804 = vld [vmem:[#allocation2 + $0x518] sm:$0xff]
    %v805 = vld [vmem:[#allocation2 + $0x520] sm:$0xf]
    %v806 = vld [vmem:[#allocation2 + $0x524] sm:$0xff]
    %v807 = vld [vmem:[#allocation2 + $0x52c] sm:$0xff]
    %v808 = vld [vmem:[#allocation2 + $0x534] sm:$0xff]
    %v809 = vld [vmem:[#allocation2 + $0x53c] sm:$0xf]
    %v810 = vld [vmem:[#allocation2 + $0x540] sm:$0xff]
    %v811 = vld [vmem:[#allocation2 + $0x548] sm:$0xff]
    %v812 = vld [vmem:[#allocation2 + $0x550] sm:$0xff]
    %v813 = vld [vmem:[#allocation2 + $0x558] sm:$0xf]
    %v814 = vld [vmem:[#allocation2 + $0x55c] sm:$0xff]
    %v815 = vld [vmem:[#allocation2 + $0x564] sm:$0xff]
    %v816 = vld [vmem:[#allocation2 + $0x56c] sm:$0xff]
    %v817 = vld [vmem:[#allocation2 + $0x574] sm:$0xf]
    %v818 = vld [vmem:[#allocation2 + $0x578] sm:$0xff]
    %v819 = vld [vmem:[#allocation2 + $0x580] sm:$0xff]
    %v820 = vld [vmem:[#allocation2 + $0x588] sm:$0xff]
    %v821 = vld [vmem:[#allocation2 + $0x590] sm:$0xf]
    %v822 = vld [vmem:[#allocation2 + $0x594] sm:$0xff]
    %v823 = vld [vmem:[#allocation2 + $0x59c] sm:$0xff]
    %v824 = vld [vmem:[#allocation2 + $0x5a4] sm:$0xff]
    %v825 = vld [vmem:[#allocation2 + $0x5ac] sm:$0xf]
    %v826 = vld [vmem:[#allocation2 + $0x5b0] sm:$0xff]
    %v827 = vld [vmem:[#allocation2 + $0x5b8] sm:$0xff]
    %v828 = vld [vmem:[#allocation2 + $0x5c0] sm:$0xff]
    %v829 = vld [vmem:[#allocation2 + $0x5c8] sm:$0xf]
    %v830 = vld [vmem:[#allocation2 + $0x5cc] sm:$0xff]
    %v831 = vld [vmem:[#allocation2 + $0x5d4] sm:$0xff]
    %v832 = vld [vmem:[#allocation2 + $0x5dc] sm:$0xff]
    %v833 = vld [vmem:[#allocation2 + $0x5e4] sm:$0xf]
    %v834 = vld [vmem:[#allocation2 + $0x5e8] sm:$0xff]
    %v835 = vld [vmem:[#allocation2 + $0x5f0] sm:$0xff]
    %v836 = vld [vmem:[#allocation2 + $0x5f8] sm:$0xff]
    %v837 = vld [vmem:[#allocation2 + $0x600] sm:$0xf]
    %v838 = vld [vmem:[#allocation2 + $0x604] sm:$0xff]
    %v839 = vld [vmem:[#allocation2 + $0x60c] sm:$0xff]
    %v840 = vld [vmem:[#allocation2 + $0x614] sm:$0xff]
    %v841 = vld [vmem:[#allocation2 + $0x61c] sm:$0xf]
    %v842 = vld [vmem:[#allocation2 + $0x620] sm:$0xff]
    %v843 = vld [vmem:[#allocation2 + $0x628] sm:$0xff]
    %v844 = vld [vmem:[#allocation2 + $0x630] sm:$0xff]
    %v845 = vld [vmem:[#allocation2 + $0x638] sm:$0xf]
    %v846 = vld [vmem:[#allocation2 + $0x63c] sm:$0xff]
    %v847 = vld [vmem:[#allocation2 + $0x644] sm:$0xff]
    %v848 = vld [vmem:[#allocation2 + $0x64c] sm:$0xff]
    %v849 = vld [vmem:[#allocation2 + $0x654] sm:$0xf]
    %v850 = vld [vmem:[#allocation2 + $0x658] sm:$0xff]
    %v851 = vld [vmem:[#allocation2 + $0x660] sm:$0xff]
    %v852 = vld [vmem:[#allocation2 + $0x668] sm:$0xff]
    %v853 = vld [vmem:[#allocation2 + $0x670] sm:$0xf]
    %v854 = vld [vmem:[#allocation2 + $0x674] sm:$0xff]
    %v855 = vld [vmem:[#allocation2 + $0x67c] sm:$0xff]
    %v856 = vld [vmem:[#allocation2 + $0x684] sm:$0xff]
    %v857 = vld [vmem:[#allocation2 + $0x68c] sm:$0xf]
    %v858 = vld [vmem:[#allocation2 + $0x690] sm:$0xff]
    %v859 = vld [vmem:[#allocation2 + $0x698] sm:$0xff]
    %v860 = vld [vmem:[#allocation2 + $0x6a0] sm:$0xff]
    %v861 = vld [vmem:[#allocation2 + $0x6a8] sm:$0xf]
    %v862 = vld [vmem:[#allocation2 + $0x6ac] sm:$0xff]
    %v863 = vld [vmem:[#allocation2 + $0x6b4] sm:$0xff]
    %v864 = vld [vmem:[#allocation2 + $0x6bc] sm:$0xff]
    %v865 = vld [vmem:[#allocation2 + $0x6c4] sm:$0xf]
    %v866 = vld [vmem:[#allocation2 + $0x6c8] sm:$0xff]
    %v867 = vld [vmem:[#allocation2 + $0x6d0] sm:$0xff]
    %v868 = vld [vmem:[#allocation2 + $0x6d8] sm:$0xff]
    %v869 = vld [vmem:[#allocation2 + $0x6e0] sm:$0xf]
    %v870 = vld [vmem:[#allocation2 + $0x6e4] sm:$0xff]
    %v871 = vld [vmem:[#allocation2 + $0x6ec] sm:$0xff]
    %v872 = vld [vmem:[#allocation2 + $0x6f4] sm:$0xff]
    %v873 = vld [vmem:[#allocation2 + $0x6fc] sm:$0xf]
    %v874 = vld [vmem:[#allocation2 + $0x700] sm:$0xff]
    %v875 = vld [vmem:[#allocation2 + $0x708] sm:$0xff]
    %v876 = vld [vmem:[#allocation2 + $0x710] sm:$0xff]
    %v877 = vld [vmem:[#allocation2 + $0x718] sm:$0xf]
    %v1138 = vunpack.c.l.b16 %v618
    %v1139 = vunpack.c.h.b16 %v618
    %v1140 = vunpack.c.l.b16 %v619
    %v1141 = vunpack.c.h.b16 %v619
    %v1142 = vunpack.c.l.b16 %v620
    %v1143 = vunpack.c.h.b16 %v620
    %v1144 = vunpack.c.l.b16 %v621
    %v1145 = vunpack.c.l.b16 %v622
    %v1146 = vunpack.c.h.b16 %v622
    %v1147 = vunpack.c.l.b16 %v623
    %v1148 = vunpack.c.h.b16 %v623
    %v1149 = vunpack.c.l.b16 %v624
    %v1150 = vunpack.c.h.b16 %v624
    %v1151 = vunpack.c.l.b16 %v625
    %v1152 = vunpack.c.l.b16 %v626
    %v1153 = vunpack.c.h.b16 %v626
    %v1154 = vunpack.c.l.b16 %v627
    %v1155 = vunpack.c.h.b16 %v627
    %v1156 = vunpack.c.l.b16 %v628
    %v1157 = vunpack.c.h.b16 %v628
    %v1158 = vunpack.c.l.b16 %v629
    %v1159 = vunpack.c.l.b16 %v630
    %v1160 = vunpack.c.h.b16 %v630
    %v1161 = vunpack.c.l.b16 %v631
    %v1162 = vunpack.c.h.b16 %v631
    %v1163 = vunpack.c.l.b16 %v632
    %v1164 = vunpack.c.h.b16 %v632
    %v1165 = vunpack.c.l.b16 %v633
    %v1166 = vunpack.c.l.b16 %v634
    %v1167 = vunpack.c.h.b16 %v634
    %v1168 = vunpack.c.l.b16 %v635
    %v1169 = vunpack.c.h.b16 %v635
    %v1170 = vunpack.c.l.b16 %v636
    %v1171 = vunpack.c.h.b16 %v636
    %v1172 = vunpack.c.l.b16 %v637
    %v1173 = vunpack.c.l.b16 %v638
    %v1174 = vunpack.c.h.b16 %v638
    %v1175 = vunpack.c.l.b16 %v639
    %v1176 = vunpack.c.h.b16 %v639
    %v1177 = vunpack.c.l.b16 %v640
    %v1178 = vunpack.c.h.b16 %v640
    %v1179 = vunpack.c.l.b16 %v641
    %v1180 = vunpack.c.l.b16 %v642
    %v1181 = vunpack.c.h.b16 %v642
    %v1182 = vunpack.c.l.b16 %v643
    %v1183 = vunpack.c.h.b16 %v643
    %v1184 = vunpack.c.l.b16 %v644
    %v1185 = vunpack.c.h.b16 %v644
    %v1186 = vunpack.c.l.b16 %v645
    %v1187 = vunpack.c.l.b16 %v646
    %v1188 = vunpack.c.h.b16 %v646
    %v1189 = vunpack.c.l.b16 %v647
    %v1190 = vunpack.c.h.b16 %v647
    %v1191 = vunpack.c.l.b16 %v648
    %v1192 = vunpack.c.h.b16 %v648
    %v1193 = vunpack.c.l.b16 %v649
    %v1194 = vunpack.c.l.b16 %v650
    %v1195 = vunpack.c.h.b16 %v650
    %v1196 = vunpack.c.l.b16 %v651
    %v1197 = vunpack.c.h.b16 %v651
    %v1198 = vunpack.c.l.b16 %v652
    %v1199 = vunpack.c.h.b16 %v652
    %v1200 = vunpack.c.l.b16 %v653
    %v1201 = vunpack.c.l.b16 %v654
    %v1202 = vunpack.c.h.b16 %v654
    %v1203 = vunpack.c.l.b16 %v655
    %v1204 = vunpack.c.h.b16 %v655
    %v1205 = vunpack.c.l.b16 %v656
    %v1206 = vunpack.c.h.b16 %v656
    %v1207 = vunpack.c.l.b16 %v657
    %v1208 = vunpack.c.l.b16 %v658
    %v1209 = vunpack.c.h.b16 %v658
    %v1210 = vunpack.c.l.b16 %v659
    %v1211 = vunpack.c.h.b16 %v659
    %v1212 = vunpack.c.l.b16 %v660
    %v1213 = vunpack.c.h.b16 %v660
    %v1214 = vunpack.c.l.b16 %v661
    %v1215 = vunpack.c.l.b16 %v662
    %v1216 = vunpack.c.h.b16 %v662
    %v1217 = vunpack.c.l.b16 %v663
    %v1218 = vunpack.c.h.b16 %v663
    %v1219 = vunpack.c.l.b16 %v664
    %v1220 = vunpack.c.h.b16 %v664
    %v1221 = vunpack.c.l.b16 %v665
    %v1222 = vunpack.c.l.b16 %v666
    %v1223 = vunpack.c.h.b16 %v666
    %v1224 = vunpack.c.l.b16 %v667
    %v1225 = vunpack.c.h.b16 %v667
    %v1226 = vunpack.c.l.b16 %v668
    %v1227 = vunpack.c.h.b16 %v668
    %v1228 = vunpack.c.l.b16 %v669
    %v1229 = vunpack.c.l.b16 %v670
    %v1230 = vunpack.c.h.b16 %v670
    %v1231 = vunpack.c.l.b16 %v671
    %v1232 = vunpack.c.h.b16 %v671
    %v1233 = vunpack.c.l.b16 %v672
    %v1234 = vunpack.c.h.b16 %v672
    %v1235 = vunpack.c.l.b16 %v673
    %v1236 = vunpack.c.l.b16 %v674
    %v1237 = vunpack.c.h.b16 %v674
    %v1238 = vunpack.c.l.b16 %v675
    %v1239 = vunpack.c.h.b16 %v675
    %v1240 = vunpack.c.l.b16 %v676
    %v1241 = vunpack.c.h.b16 %v676
    %v1242 = vunpack.c.l.b16 %v677
    %v1243 = vunpack.c.l.b16 %v678
    %v1244 = vunpack.c.h.b16 %v678
    %v1245 = vunpack.c.l.b16 %v679
    %v1246 = vunpack.c.h.b16 %v679
    %v1247 = vunpack.c.l.b16 %v680
    %v1248 = vunpack.c.h.b16 %v680
    %v1249 = vunpack.c.l.b16 %v681
    %v1250 = vunpack.c.l.b16 %v682
    %v1251 = vunpack.c.h.b16 %v682
    %v1252 = vunpack.c.l.b16 %v683
    %v1253 = vunpack.c.h.b16 %v683
    %v1254 = vunpack.c.l.b16 %v684
    %v1255 = vunpack.c.h.b16 %v684
    %v1256 = vunpack.c.l.b16 %v685
    %v1257 = vunpack.c.l.b16 %v686
    %v1258 = vunpack.c.h.b16 %v686
    %v1259 = vunpack.c.l.b16 %v687
    %v1260 = vunpack.c.h.b16 %v687
    %v1261 = vunpack.c.l.b16 %v688
    %v1262 = vunpack.c.h.b16 %v688
    %v1263 = vunpack.c.l.b16 %v689
    %v1264 = vunpack.c.l.b16 %v690
    %v1265 = vunpack.c.h.b16 %v690
    %v1266 = vunpack.c.l.b16 %v691
    %v1267 = vunpack.c.h.b16 %v691
    %v1268 = vunpack.c.l.b16 %v692
    %v1269 = vunpack.c.h.b16 %v692
    %v1270 = vunpack.c.l.b16 %v693
    %v1271 = vunpack.c.l.b16 %v694
    %v1272 = vunpack.c.h.b16 %v694
    %v1273 = vunpack.c.l.b16 %v695
    %v1274 = vunpack.c.h.b16 %v695
    %v1275 = vunpack.c.l.b16 %v696
    %v1276 = vunpack.c.h.b16 %v696
    %v1277 = vunpack.c.l.b16 %v697
    %v1278 = vunpack.c.l.b16 %v698
    %v1279 = vunpack.c.h.b16 %v698
    %v1280 = vunpack.c.l.b16 %v699
    %v1281 = vunpack.c.h.b16 %v699
    %v1282 = vunpack.c.l.b16 %v700
    %v1283 = vunpack.c.h.b16 %v700
    %v1284 = vunpack.c.l.b16 %v701
    %v1285 = vunpack.c.l.b16 %v702
    %v1286 = vunpack.c.h.b16 %v702
    %v1287 = vunpack.c.l.b16 %v703
    %v1288 = vunpack.c.h.b16 %v703
    %v1289 = vunpack.c.l.b16 %v704
    %v1290 = vunpack.c.h.b16 %v704
    %v1291 = vunpack.c.l.b16 %v705
    %v1292 = vunpack.c.l.b16 %v706
    %v1293 = vunpack.c.h.b16 %v706
    %v1294 = vunpack.c.l.b16 %v707
    %v1295 = vunpack.c.h.b16 %v707
    %v1296 = vunpack.c.l.b16 %v708
    %v1297 = vunpack.c.h.b16 %v708
    %v1298 = vunpack.c.l.b16 %v709
    %v1299 = vunpack.c.l.b16 %v710
    %v1300 = vunpack.c.h.b16 %v710
    %v1301 = vunpack.c.l.b16 %v711
    %v1302 = vunpack.c.h.b16 %v711
    %v1303 = vunpack.c.l.b16 %v712
    %v1304 = vunpack.c.h.b16 %v712
    %v1305 = vunpack.c.l.b16 %v713
    %v1306 = vunpack.c.l.b16 %v714
    %v1307 = vunpack.c.h.b16 %v714
    %v1308 = vunpack.c.l.b16 %v715
    %v1309 = vunpack.c.h.b16 %v715
    %v1310 = vunpack.c.l.b16 %v716
    %v1311 = vunpack.c.h.b16 %v716
    %v1312 = vunpack.c.l.b16 %v717
    %v1313 = vunpack.c.l.b16 %v718
    %v1314 = vunpack.c.h.b16 %v718
    %v1315 = vunpack.c.l.b16 %v719
    %v1316 = vunpack.c.h.b16 %v719
    %v1317 = vunpack.c.l.b16 %v720
    %v1318 = vunpack.c.h.b16 %v720
    %v1319 = vunpack.c.l.b16 %v721
    %v1320 = vunpack.c.l.b16 %v722
    %v1321 = vunpack.c.h.b16 %v722
    %v1322 = vunpack.c.l.b16 %v723
    %v1323 = vunpack.c.h.b16 %v723
    %v1324 = vunpack.c.l.b16 %v724
    %v1325 = vunpack.c.h.b16 %v724
    %v1326 = vunpack.c.l.b16 %v725
    %v1327 = vunpack.c.l.b16 %v726
    %v1328 = vunpack.c.h.b16 %v726
    %v1329 = vunpack.c.l.b16 %v727
    %v1330 = vunpack.c.h.b16 %v727
    %v1331 = vunpack.c.l.b16 %v728
    %v1332 = vunpack.c.h.b16 %v728
    %v1333 = vunpack.c.l.b16 %v729
    %v1334 = vunpack.c.l.b16 %v730
    %v1335 = vunpack.c.h.b16 %v730
    %v1336 = vunpack.c.l.b16 %v731
    %v1337 = vunpack.c.h.b16 %v731
    %v1338 = vunpack.c.l.b16 %v732
    %v1339 = vunpack.c.h.b16 %v732
    %v1340 = vunpack.c.l.b16 %v733
    %v1341 = vunpack.c.l.b16 %v734
    %v1342 = vunpack.c.h.b16 %v734
    %v1343 = vunpack.c.l.b16 %v735
    %v1344 = vunpack.c.h.b16 %v735
    %v1345 = vunpack.c.l.b16 %v736
    %v1346 = vunpack.c.h.b16 %v736
    %v1347 = vunpack.c.l.b16 %v737
    %v1348 = vunpack.c.l.b16 %v738
    %v1349 = vunpack.c.h.b16 %v738
    %v1350 = vunpack.c.l.b16 %v739
    %v1351 = vunpack.c.h.b16 %v739
    %v1352 = vunpack.c.l.b16 %v740
    %v1353 = vunpack.c.h.b16 %v740
    %v1354 = vunpack.c.l.b16 %v741
    %v1355 = vunpack.c.l.b16 %v742
    %v1356 = vunpack.c.h.b16 %v742
    %v1357 = vunpack.c.l.b16 %v743
    %v1358 = vunpack.c.h.b16 %v743
    %v1359 = vunpack.c.l.b16 %v744
    %v1360 = vunpack.c.h.b16 %v744
    %v1361 = vunpack.c.l.b16 %v745
    %v1362 = vunpack.c.l.b16 %v746
    %v1363 = vunpack.c.h.b16 %v746
    %v1364 = vunpack.c.l.b16 %v747
    %v1365 = vunpack.c.h.b16 %v747
    %v1366 = vunpack.c.l.b16 %v748
    %v1367 = vunpack.c.h.b16 %v748
    %v1368 = vunpack.c.l.b16 %v749
    %v1369 = vunpack.c.l.b16 %v750
    %v1370 = vunpack.c.h.b16 %v750
    %v1371 = vunpack.c.l.b16 %v751
    %v1372 = vunpack.c.h.b16 %v751
    %v1373 = vunpack.c.l.b16 %v752
    %v1374 = vunpack.c.h.b16 %v752
    %v1375 = vunpack.c.l.b16 %v753
    %v1376 = vunpack.c.l.b16 %v754
    %v1377 = vunpack.c.h.b16 %v754
    %v1378 = vunpack.c.l.b16 %v755
    %v1379 = vunpack.c.h.b16 %v755
    %v1380 = vunpack.c.l.b16 %v756
    %v1381 = vunpack.c.h.b16 %v756
    %v1382 = vunpack.c.l.b16 %v757
    %v1383 = vunpack.c.l.b16 %v758
    %v1384 = vunpack.c.h.b16 %v758
    %v1385 = vunpack.c.l.b16 %v759
    %v1386 = vunpack.c.h.b16 %v759
    %v1387 = vunpack.c.l.b16 %v760
    %v1388 = vunpack.c.h.b16 %v760
    %v1389 = vunpack.c.l.b16 %v761
    %v1390 = vunpack.c.l.b16 %v762
    %v1391 = vunpack.c.h.b16 %v762
    %v1392 = vunpack.c.l.b16 %v763
    %v1393 = vunpack.c.h.b16 %v763
    %v1394 = vunpack.c.l.b16 %v764
    %v1395 = vunpack.c.h.b16 %v764
    %v1396 = vunpack.c.l.b16 %v765
    %v1397 = vunpack.c.l.b16 %v766
    %v1398 = vunpack.c.h.b16 %v766
    %v1399 = vunpack.c.l.b16 %v767
    %v1400 = vunpack.c.h.b16 %v767
    %v1401 = vunpack.c.l.b16 %v768
    %v1402 = vunpack.c.h.b16 %v768
    %v1403 = vunpack.c.l.b16 %v769
    %v1404 = vunpack.c.l.b16 %v770
    %v1405 = vunpack.c.h.b16 %v770
    %v1406 = vunpack.c.l.b16 %v771
    %v1407 = vunpack.c.h.b16 %v771
    %v1408 = vunpack.c.l.b16 %v772
    %v1409 = vunpack.c.h.b16 %v772
    %v1410 = vunpack.c.l.b16 %v773
    %v1411 = vunpack.c.l.b16 %v774
    %v1412 = vunpack.c.h.b16 %v774
    %v1413 = vunpack.c.l.b16 %v775
    %v1414 = vunpack.c.h.b16 %v775
    %v1415 = vunpack.c.l.b16 %v776
    %v1416 = vunpack.c.h.b16 %v776
    %v1417 = vunpack.c.l.b16 %v777
    %v1418 = vunpack.c.l.b16 %v778
    %v1419 = vunpack.c.h.b16 %v778
    %v1420 = vunpack.c.l.b16 %v779
    %v1421 = vunpack.c.h.b16 %v779
    %v1422 = vunpack.c.l.b16 %v780
    %v1423 = vunpack.c.h.b16 %v780
    %v1424 = vunpack.c.l.b16 %v781
    %v1425 = vunpack.c.l.b16 %v782
    %v1426 = vunpack.c.h.b16 %v782
    %v1427 = vunpack.c.l.b16 %v783
    %v1428 = vunpack.c.h.b16 %v783
    %v1429 = vunpack.c.l.b16 %v784
    %v1430 = vunpack.c.h.b16 %v784
    %v1431 = vunpack.c.l.b16 %v785
    %v1432 = vunpack.c.l.b16 %v786
    %v1433 = vunpack.c.h.b16 %v786
    %v1434 = vunpack.c.l.b16 %v787
    %v1435 = vunpack.c.h.b16 %v787
    %v1436 = vunpack.c.l.b16 %v788
    %v1437 = vunpack.c.h.b16 %v788
    %v1438 = vunpack.c.l.b16 %v789
    %v1439 = vunpack.c.l.b16 %v790
    %v1440 = vunpack.c.h.b16 %v790
    %v1441 = vunpack.c.l.b16 %v791
    %v1442 = vunpack.c.h.b16 %v791
    %v1443 = vunpack.c.l.b16 %v792
    %v1444 = vunpack.c.h.b16 %v792
    %v1445 = vunpack.c.l.b16 %v793
    %v1446 = vunpack.c.l.b16 %v794
    %v1447 = vunpack.c.h.b16 %v794
    %v1448 = vunpack.c.l.b16 %v795
    %v1449 = vunpack.c.h.b16 %v795
    %v1450 = vunpack.c.l.b16 %v796
    %v1451 = vunpack.c.h.b16 %v796
    %v1452 = vunpack.c.l.b16 %v797
    %v1453 = vunpack.c.l.b16 %v798
    %v1454 = vunpack.c.h.b16 %v798
    %v1455 = vunpack.c.l.b16 %v799
    %v1456 = vunpack.c.h.b16 %v799
    %v1457 = vunpack.c.l.b16 %v800
    %v1458 = vunpack.c.h.b16 %v800
    %v1459 = vunpack.c.l.b16 %v801
    %v1460 = vunpack.c.l.b16 %v802
    %v1461 = vunpack.c.h.b16 %v802
    %v1462 = vunpack.c.l.b16 %v803
    %v1463 = vunpack.c.h.b16 %v803
    %v1464 = vunpack.c.l.b16 %v804
    %v1465 = vunpack.c.h.b16 %v804
    %v1466 = vunpack.c.l.b16 %v805
    %v1467 = vunpack.c.l.b16 %v806
    %v1468 = vunpack.c.h.b16 %v806
    %v1469 = vunpack.c.l.b16 %v807
    %v1470 = vunpack.c.h.b16 %v807
    %v1471 = vunpack.c.l.b16 %v808
    %v1472 = vunpack.c.h.b16 %v808
    %v1473 = vunpack.c.l.b16 %v809
    %v1474 = vunpack.c.l.b16 %v810
    %v1475 = vunpack.c.h.b16 %v810
    %v1476 = vunpack.c.l.b16 %v811
    %v1477 = vunpack.c.h.b16 %v811
    %v1478 = vunpack.c.l.b16 %v812
    %v1479 = vunpack.c.h.b16 %v812
    %v1480 = vunpack.c.l.b16 %v813
    %v1481 = vunpack.c.l.b16 %v814
    %v1482 = vunpack.c.h.b16 %v814
    %v1483 = vunpack.c.l.b16 %v815
    %v1484 = vunpack.c.h.b16 %v815
    %v1485 = vunpack.c.l.b16 %v816
    %v1486 = vunpack.c.h.b16 %v816
    %v1487 = vunpack.c.l.b16 %v817
    %v1488 = vunpack.c.l.b16 %v818
    %v1489 = vunpack.c.h.b16 %v818
    %v1490 = vunpack.c.l.b16 %v819
    %v1491 = vunpack.c.h.b16 %v819
    %v1492 = vunpack.c.l.b16 %v820
    %v1493 = vunpack.c.h.b16 %v820
    %v1494 = vunpack.c.l.b16 %v821
    %v1495 = vunpack.c.l.b16 %v822
    %v1496 = vunpack.c.h.b16 %v822
    %v1497 = vunpack.c.l.b16 %v823
    %v1498 = vunpack.c.h.b16 %v823
    %v1499 = vunpack.c.l.b16 %v824
    %v1500 = vunpack.c.h.b16 %v824
    %v1501 = vunpack.c.l.b16 %v825
    %v1502 = vunpack.c.l.b16 %v826
    %v1503 = vunpack.c.h.b16 %v826
    %v1504 = vunpack.c.l.b16 %v827
    %v1505 = vunpack.c.h.b16 %v827
    %v1506 = vunpack.c.l.b16 %v828
    %v1507 = vunpack.c.h.b16 %v828
    %v1508 = vunpack.c.l.b16 %v829
    %v1509 = vunpack.c.l.b16 %v830
    %v1510 = vunpack.c.h.b16 %v830
    %v1511 = vunpack.c.l.b16 %v831
    %v1512 = vunpack.c.h.b16 %v831
    %v1513 = vunpack.c.l.b16 %v832
    %v1514 = vunpack.c.h.b16 %v832
    %v1515 = vunpack.c.l.b16 %v833
    %v1516 = vunpack.c.l.b16 %v834
    %v1517 = vunpack.c.h.b16 %v834
    %v1518 = vunpack.c.l.b16 %v835
    %v1519 = vunpack.c.h.b16 %v835
    %v1520 = vunpack.c.l.b16 %v836
    %v1521 = vunpack.c.h.b16 %v836
    %v1522 = vunpack.c.l.b16 %v837
    %v1523 = vunpack.c.l.b16 %v838
    %v1524 = vunpack.c.h.b16 %v838
    %v1525 = vunpack.c.l.b16 %v839
    %v1526 = vunpack.c.h.b16 %v839
    %v1527 = vunpack.c.l.b16 %v840
    %v1528 = vunpack.c.h.b16 %v840
    %v1529 = vunpack.c.l.b16 %v841
    %v1530 = vunpack.c.l.b16 %v842
    %v1531 = vunpack.c.h.b16 %v842
    %v1532 = vunpack.c.l.b16 %v843
    %v1533 = vunpack.c.h.b16 %v843
    %v1534 = vunpack.c.l.b16 %v844
    %v1535 = vunpack.c.h.b16 %v844
    %v1536 = vunpack.c.l.b16 %v845
    %v1537 = vunpack.c.l.b16 %v846
    %v1538 = vunpack.c.h.b16 %v846
    %v1539 = vunpack.c.l.b16 %v847
    %v1540 = vunpack.c.h.b16 %v847
    %v1541 = vunpack.c.l.b16 %v848
    %v1542 = vunpack.c.h.b16 %v848
    %v1543 = vunpack.c.l.b16 %v849
    %v1544 = vunpack.c.l.b16 %v850
    %v1545 = vunpack.c.h.b16 %v850
    %v1546 = vunpack.c.l.b16 %v851
    %v1547 = vunpack.c.h.b16 %v851
    %v1548 = vunpack.c.l.b16 %v852
    %v1549 = vunpack.c.h.b16 %v852
    %v1550 = vunpack.c.l.b16 %v853
    %v1551 = vunpack.c.l.b16 %v854
    %v1552 = vunpack.c.h.b16 %v854
    %v1553 = vunpack.c.l.b16 %v855
    %v1554 = vunpack.c.h.b16 %v855
    %v1555 = vunpack.c.l.b16 %v856
    %v1556 = vunpack.c.h.b16 %v856
    %v1557 = vunpack.c.l.b16 %v857
    %v1558 = vunpack.c.l.b16 %v858
    %v1559 = vunpack.c.h.b16 %v858
    %v1560 = vunpack.c.l.b16 %v859
    %v1561 = vunpack.c.h.b16 %v859
    %v1562 = vunpack.c.l.b16 %v860
    %v1563 = vunpack.c.h.b16 %v860
    %v1564 = vunpack.c.l.b16 %v861
    %v1565 = vunpack.c.l.b16 %v862
    %v1566 = vunpack.c.h.b16 %v862
    %v1567 = vunpack.c.l.b16 %v863
    %v1568 = vunpack.c.h.b16 %v863
    %v1569 = vunpack.c.l.b16 %v864
    %v1570 = vunpack.c.h.b16 %v864
    %v1571 = vunpack.c.l.b16 %v865
    %v1572 = vunpack.c.l.b16 %v866
    %v1573 = vunpack.c.h.b16 %v866
    %v1574 = vunpack.c.l.b16 %v867
    %v1575 = vunpack.c.h.b16 %v867
    %v1576 = vunpack.c.l.b16 %v868
    %v1577 = vunpack.c.h.b16 %v868
    %v1578 = vunpack.c.l.b16 %v869
    %v1579 = vunpack.c.l.b16 %v870
    %v1580 = vunpack.c.h.b16 %v870
    %v1581 = vunpack.c.l.b16 %v871
    %v1582 = vunpack.c.h.b16 %v871
    %v1583 = vunpack.c.l.b16 %v872
    %v1584 = vunpack.c.h.b16 %v872
    %v1585 = vunpack.c.l.b16 %v873
    %v1586 = vunpack.c.l.b16 %v874
    %v1587 = vunpack.c.h.b16 %v874
    %v1588 = vunpack.c.l.b16 %v875
    %v1589 = vunpack.c.h.b16 %v875
    %v1590 = vunpack.c.l.b16 %v876
    %v1591 = vunpack.c.h.b16 %v876
    %v1592 = vunpack.c.l.b16 %v877
    %v1593 = vpack.c.b16 %v1145, %v1138
    %v1594 = vpack.c.b16 %v1146, %v1139
    %v1595 = vpack.c.b16 %v1147, %v1140
    %v1596 = vpack.c.b16 %v1148, %v1141
    %v1597 = vpack.c.b16 %v1149, %v1142
    %v1598 = vpack.c.b16 %v1150, %v1143
    %v1599 = vpack.c.b16 %v1151, %v1144
    %v1600 = vpack.c.b16 %v1159, %v1152
    %v1601 = vpack.c.b16 %v1160, %v1153
    %v1602 = vpack.c.b16 %v1161, %v1154
    %v1603 = vpack.c.b16 %v1162, %v1155
    %v1604 = vpack.c.b16 %v1163, %v1156
    %v1605 = vpack.c.b16 %v1164, %v1157
    %v1606 = vpack.c.b16 %v1165, %v1158
    %v1607 = vpack.c.b16 %v1173, %v1166
    %v1608 = vpack.c.b16 %v1174, %v1167
    %v1609 = vpack.c.b16 %v1175, %v1168
    %v1610 = vpack.c.b16 %v1176, %v1169
    %v1611 = vpack.c.b16 %v1177, %v1170
    %v1612 = vpack.c.b16 %v1178, %v1171
    %v1613 = vpack.c.b16 %v1179, %v1172
    %v1614 = vpack.c.b16 %v1187, %v1180
    %v1615 = vpack.c.b16 %v1188, %v1181
    %v1616 = vpack.c.b16 %v1189, %v1182
    %v1617 = vpack.c.b16 %v1190, %v1183
    %v1618 = vpack.c.b16 %v1191, %v1184
    %v1619 = vpack.c.b16 %v1192, %v1185
    %v1620 = vpack.c.b16 %v1193, %v1186
    %v1621 = vpack.c.b16 %v1201, %v1194
    %v1622 = vpack.c.b16 %v1202, %v1195
    %v1623 = vpack.c.b16 %v1203, %v1196
    %v1624 = vpack.c.b16 %v1204, %v1197
    %v1625 = vpack.c.b16 %v1205, %v1198
    %v1626 = vpack.c.b16 %v1206, %v1199
    %v1627 = vpack.c.b16 %v1207, %v1200
    %v1628 = vpack.c.b16 %v1215, %v1208
    %v1629 = vpack.c.b16 %v1216, %v1209
    %v1630 = vpack.c.b16 %v1217, %v1210
    %v1631 = vpack.c.b16 %v1218, %v1211
    %v1632 = vpack.c.b16 %v1219, %v1212
    %v1633 = vpack.c.b16 %v1220, %v1213
    %v1634 = vpack.c.b16 %v1221, %v1214
    %v1635 = vpack.c.b16 %v1229, %v1222
    %v1636 = vpack.c.b16 %v1230, %v1223
    %v1637 = vpack.c.b16 %v1231, %v1224
    %v1638 = vpack.c.b16 %v1232, %v1225
    %v1639 = vpack.c.b16 %v1233, %v1226
    %v1640 = vpack.c.b16 %v1234, %v1227
    %v1641 = vpack.c.b16 %v1235, %v1228
    %v1642 = vpack.c.b16 %v1243, %v1236
    %v1643 = vpack.c.b16 %v1244, %v1237
    %v1644 = vpack.c.b16 %v1245, %v1238
    %v1645 = vpack.c.b16 %v1246, %v1239
    %v1646 = vpack.c.b16 %v1247, %v1240
    %v1647 = vpack.c.b16 %v1248, %v1241
    %v1648 = vpack.c.b16 %v1249, %v1242
    %v1649 = vpack.c.b16 %v1257, %v1250
    %v1650 = vpack.c.b16 %v1258, %v1251
    %v1651 = vpack.c.b16 %v1259, %v1252
    %v1652 = vpack.c.b16 %v1260, %v1253
    %v1653 = vpack.c.b16 %v1261, %v1254
    %v1654 = vpack.c.b16 %v1262, %v1255
    %v1655 = vpack.c.b16 %v1263, %v1256
    %v1656 = vpack.c.b16 %v1271, %v1264
    %v1657 = vpack.c.b16 %v1272, %v1265
    %v1658 = vpack.c.b16 %v1273, %v1266
    %v1659 = vpack.c.b16 %v1274, %v1267
    %v1660 = vpack.c.b16 %v1275, %v1268
    %v1661 = vpack.c.b16 %v1276, %v1269
    %v1662 = vpack.c.b16 %v1277, %v1270
    %v1663 = vpack.c.b16 %v1285, %v1278
    %v1664 = vpack.c.b16 %v1286, %v1279
    %v1665 = vpack.c.b16 %v1287, %v1280
    %v1666 = vpack.c.b16 %v1288, %v1281
    %v1667 = vpack.c.b16 %v1289, %v1282
    %v1668 = vpack.c.b16 %v1290, %v1283
    %v1669 = vpack.c.b16 %v1291, %v1284
    %v1670 = vpack.c.b16 %v1299, %v1292
    %v1671 = vpack.c.b16 %v1300, %v1293
    %v1672 = vpack.c.b16 %v1301, %v1294
    %v1673 = vpack.c.b16 %v1302, %v1295
    %v1674 = vpack.c.b16 %v1303, %v1296
    %v1675 = vpack.c.b16 %v1304, %v1297
    %v1676 = vpack.c.b16 %v1305, %v1298
    %v1677 = vpack.c.b16 %v1313, %v1306
    %v1678 = vpack.c.b16 %v1314, %v1307
    %v1679 = vpack.c.b16 %v1315, %v1308
    %v1680 = vpack.c.b16 %v1316, %v1309
    %v1681 = vpack.c.b16 %v1317, %v1310
    %v1682 = vpack.c.b16 %v1318, %v1311
    %v1683 = vpack.c.b16 %v1319, %v1312
    %v1684 = vpack.c.b16 %v1327, %v1320
    %v1685 = vpack.c.b16 %v1328, %v1321
    %v1686 = vpack.c.b16 %v1329, %v1322
    %v1687 = vpack.c.b16 %v1330, %v1323
    %v1688 = vpack.c.b16 %v1331, %v1324
    %v1689 = vpack.c.b16 %v1332, %v1325
    %v1690 = vpack.c.b16 %v1333, %v1326
    %v1691 = vpack.c.b16 %v1341, %v1334
    %v1692 = vpack.c.b16 %v1342, %v1335
    %v1693 = vpack.c.b16 %v1343, %v1336
    %v1694 = vpack.c.b16 %v1344, %v1337
    %v1695 = vpack.c.b16 %v1345, %v1338
    %v1696 = vpack.c.b16 %v1346, %v1339
    %v1697 = vpack.c.b16 %v1347, %v1340
    %v1698 = vpack.c.b16 %v1355, %v1348
    %v1699 = vpack.c.b16 %v1356, %v1349
    %v1700 = vpack.c.b16 %v1357, %v1350
    %v1701 = vpack.c.b16 %v1358, %v1351
    %v1702 = vpack.c.b16 %v1359, %v1352
    %v1703 = vpack.c.b16 %v1360, %v1353
    %v1704 = vpack.c.b16 %v1361, %v1354
    %v1705 = vpack.c.b16 %v1369, %v1362
    %v1706 = vpack.c.b16 %v1370, %v1363
    %v1707 = vpack.c.b16 %v1371, %v1364
    %v1708 = vpack.c.b16 %v1372, %v1365
    %v1709 = vpack.c.b16 %v1373, %v1366
    %v1710 = vpack.c.b16 %v1374, %v1367
    %v1711 = vpack.c.b16 %v1375, %v1368
    %v1712 = vpack.c.b16 %v1383, %v1376
    %v1713 = vpack.c.b16 %v1384, %v1377
    %v1714 = vpack.c.b16 %v1385, %v1378
    %v1715 = vpack.c.b16 %v1386, %v1379
    %v1716 = vpack.c.b16 %v1387, %v1380
    %v1717 = vpack.c.b16 %v1388, %v1381
    %v1718 = vpack.c.b16 %v1389, %v1382
    %v1719 = vpack.c.b16 %v1397, %v1390
    %v1720 = vpack.c.b16 %v1398, %v1391
    %v1721 = vpack.c.b16 %v1399, %v1392
    %v1722 = vpack.c.b16 %v1400, %v1393
    %v1723 = vpack.c.b16 %v1401, %v1394
    %v1724 = vpack.c.b16 %v1402, %v1395
    %v1725 = vpack.c.b16 %v1403, %v1396
    %v1726 = vpack.c.b16 %v1411, %v1404
    %v1727 = vpack.c.b16 %v1412, %v1405
    %v1728 = vpack.c.b16 %v1413, %v1406
    %v1729 = vpack.c.b16 %v1414, %v1407
    %v1730 = vpack.c.b16 %v1415, %v1408
    %v1731 = vpack.c.b16 %v1416, %v1409
    %v1732 = vpack.c.b16 %v1417, %v1410
    %v1733 = vpack.c.b16 %v1425, %v1418
    %v1734 = vpack.c.b16 %v1426, %v1419
    %v1735 = vpack.c.b16 %v1427, %v1420
    %v1736 = vpack.c.b16 %v1428, %v1421
    %v1737 = vpack.c.b16 %v1429, %v1422
    %v1738 = vpack.c.b16 %v1430, %v1423
    %v1739 = vpack.c.b16 %v1431, %v1424
    %v1740 = vpack.c.b16 %v1439, %v1432
    %v1741 = vpack.c.b16 %v1440, %v1433
    %v1742 = vpack.c.b16 %v1441, %v1434
    %v1743 = vpack.c.b16 %v1442, %v1435
    %v1744 = vpack.c.b16 %v1443, %v1436
    %v1745 = vpack.c.b16 %v1444, %v1437
    %v1746 = vpack.c.b16 %v1445, %v1438
    %v1747 = vpack.c.b16 %v1453, %v1446
    %v1748 = vpack.c.b16 %v1454, %v1447
    %v1749 = vpack.c.b16 %v1455, %v1448
    %v1750 = vpack.c.b16 %v1456, %v1449
    %v1751 = vpack.c.b16 %v1457, %v1450
    %v1752 = vpack.c.b16 %v1458, %v1451
    %v1753 = vpack.c.b16 %v1459, %v1452
    %v1754 = vpack.c.b16 %v1467, %v1460
    %v1755 = vpack.c.b16 %v1468, %v1461
    %v1756 = vpack.c.b16 %v1469, %v1462
    %v1757 = vpack.c.b16 %v1470, %v1463
    %v1758 = vpack.c.b16 %v1471, %v1464
    %v1759 = vpack.c.b16 %v1472, %v1465
    %v1760 = vpack.c.b16 %v1473, %v1466
    %v1761 = vpack.c.b16 %v1481, %v1474
    %v1762 = vpack.c.b16 %v1482, %v1475
    %v1763 = vpack.c.b16 %v1483, %v1476
    %v1764 = vpack.c.b16 %v1484, %v1477
    %v1765 = vpack.c.b16 %v1485, %v1478
    %v1766 = vpack.c.b16 %v1486, %v1479
    %v1767 = vpack.c.b16 %v1487, %v1480
    %v1768 = vpack.c.b16 %v1495, %v1488
    %v1769 = vpack.c.b16 %v1496, %v1489
    %v1770 = vpack.c.b16 %v1497, %v1490
    %v1771 = vpack.c.b16 %v1498, %v1491
    %v1772 = vpack.c.b16 %v1499, %v1492
    %v1773 = vpack.c.b16 %v1500, %v1493
    %v1774 = vpack.c.b16 %v1501, %v1494
    %v1775 = vpack.c.b16 %v1509, %v1502
    %v1776 = vpack.c.b16 %v1510, %v1503
    %v1777 = vpack.c.b16 %v1511, %v1504
    %v1778 = vpack.c.b16 %v1512, %v1505
    %v1779 = vpack.c.b16 %v1513, %v1506
    %v1780 = vpack.c.b16 %v1514, %v1507
    %v1781 = vpack.c.b16 %v1515, %v1508
    %v1782 = vpack.c.b16 %v1523, %v1516
    %v1783 = vpack.c.b16 %v1524, %v1517
    %v1784 = vpack.c.b16 %v1525, %v1518
    %v1785 = vpack.c.b16 %v1526, %v1519
    %v1786 = vpack.c.b16 %v1527, %v1520
    %v1787 = vpack.c.b16 %v1528, %v1521
    %v1788 = vpack.c.b16 %v1529, %v1522
    %v1789 = vpack.c.b16 %v1537, %v1530
    %v1790 = vpack.c.b16 %v1538, %v1531
    %v1791 = vpack.c.b16 %v1539, %v1532
    %v1792 = vpack.c.b16 %v1540, %v1533
    %v1793 = vpack.c.b16 %v1541, %v1534
    %v1794 = vpack.c.b16 %v1542, %v1535
    %v1795 = vpack.c.b16 %v1543, %v1536
    %v1796 = vpack.c.b16 %v1551, %v1544
    %v1797 = vpack.c.b16 %v1552, %v1545
    %v1798 = vpack.c.b16 %v1553, %v1546
    %v1799 = vpack.c.b16 %v1554, %v1547
    %v1800 = vpack.c.b16 %v1555, %v1548
    %v1801 = vpack.c.b16 %v1556, %v1549
    %v1802 = vpack.c.b16 %v1557, %v1550
    %v1803 = vpack.c.b16 %v1565, %v1558
    %v1804 = vpack.c.b16 %v1566, %v1559
    %v1805 = vpack.c.b16 %v1567, %v1560
    %v1806 = vpack.c.b16 %v1568, %v1561
    %v1807 = vpack.c.b16 %v1569, %v1562
    %v1808 = vpack.c.b16 %v1570, %v1563
    %v1809 = vpack.c.b16 %v1571, %v1564
    %v1810 = vpack.c.b16 %v1579, %v1572
    %v1811 = vpack.c.b16 %v1580, %v1573
    %v1812 = vpack.c.b16 %v1581, %v1574
    %v1813 = vpack.c.b16 %v1582, %v1575
    %v1814 = vpack.c.b16 %v1583, %v1576
    %v1815 = vpack.c.b16 %v1584, %v1577
    %v1816 = vpack.c.b16 %v1585, %v1578
    %v1817 = vpack.c.b16 %v1586, %v1586
    %v1818 = vpack.c.b16 %v1587, %v1587
    %v1819 = vpack.c.b16 %v1588, %v1588
    %v1820 = vpack.c.b16 %v1589, %v1589
    %v1821 = vpack.c.b16 %v1590, %v1590
    %v1822 = vpack.c.b16 %v1591, %v1591
    %v1823 = vpack.c.b16 %v1592, %v1592
    %vm2048 = vcmask 64512
    %v2050 = vsel %vm2048, %v617, 0
    %vm2052 = vcmask 1043456
    %v2054 = vsel %vm2052, %v1817, 0
    %v2057 = vsel %vm2052, %v1818, 0
    %v2060 = vsel %vm2052, %v1819, 0
    %v2063 = vsel %vm2052, %v1820, 0
    %v2066 = vsel %vm2052, %v1821, 0
    %v2069 = vsel %vm2052, %v1822, 0
    %v2072 = vsel %vm2052, %v1823, 0
    %2074 = vmatpush.bf16.msra.mxu0 %v1642
    %2075 = vmatpush.bf16.msra.mxu0 %v1635
    %2076 = vmatpush.bf16.msra.mxu0 %v1628
    %2077 = vmatpush.bf16.msra.mxu0 %v1621
    %2078 = vmatpush.bf16.msra.mxu0 %v1614
    %2079 = vmatpush.bf16.msra.mxu0 %v1607
    %2080 = vmatpush.bf16.msra.mxu0 %v1600
    %2081 = vmatpush.bf16.msra.mxu0 %v1593
    %2082 = vmatmul.bf16.gmra.mxu0 %v613
    %v2083 = vpop.f32.mrf.mxu0
    %v2084 = vadd.f32 0.0, %v2083
    %v2085 = vpop.f32.mrf.mxu0
    %2086 = vdwg.mxu0
    %2087 = vmatpush.bf16.msra.mxu0 %v1698
    %2088 = vmatpush.bf16.msra.mxu0 %v1691
    %2089 = vmatpush.bf16.msra.mxu0 %v1684
    %2090 = vmatpush.bf16.msra.mxu0 %v1677
    %2091 = vmatpush.bf16.msra.mxu0 %v1670
    %2092 = vmatpush.bf16.msra.mxu0 %v1663
    %2093 = vmatpush.bf16.msra.mxu0 %v1656
    %2094 = vmatpush.bf16.msra.mxu0 %v1649
    %2095 = vmatmul.bf16.gmra.mxu0 %v614
    %v2096 = vpop.f32.mrf.mxu0
    %v2097 = vadd.f32 %v2084, %v2096
    %v2098 = vpop.f32.mrf.mxu0
    %2099 = vdwg.mxu0
    %2100 = vmatpush.bf16.msra.mxu0 %v1754
    %2101 = vmatpush.bf16.msra.mxu0 %v1747
    %2102 = vmatpush.bf16.msra.mxu0 %v1740
    %2103 = vmatpush.bf16.msra.mxu0 %v1733
    %2104 = vmatpush.bf16.msra.mxu0 %v1726
    %2105 = vmatpush.bf16.msra.mxu0 %v1719
    %2106 = vmatpush.bf16.msra.mxu0 %v1712
    %2107 = vmatpush.bf16.msra.mxu0 %v1705
    %2108 = vmatmul.bf16.gmra.mxu0 %v615
    %v2109 = vpop.f32.mrf.mxu0
    %v2110 = vadd.f32 %v2097, %v2109
    %v2111 = vpop.f32.mrf.mxu0
    %2112 = vdwg.mxu0
    %2113 = vmatpush.bf16.msra.mxu0 %v1810
    %2114 = vmatpush.bf16.msra.mxu0 %v1803
    %2115 = vmatpush.bf16.msra.mxu0 %v1796
    %2116 = vmatpush.bf16.msra.mxu0 %v1789
    %2117 = vmatpush.bf16.msra.mxu0 %v1782
    %2118 = vmatpush.bf16.msra.mxu0 %v1775
    %2119 = vmatpush.bf16.msra.mxu0 %v1768
    %2120 = vmatpush.bf16.msra.mxu0 %v1761
    %2121 = vmatmul.bf16.gmra.mxu0 %v616
    %v2122 = vpop.f32.mrf.mxu0
    %v2123 = vadd.f32 %v2110, %v2122
    %v2124 = vpop.f32.mrf.mxu0
    %2125 = vdwg.mxu0
    %2126 = vmatpush.bf16.msra.mxu0 0
    %2127 = vmatpush.bf16.msra.mxu0 0
    %2128 = vmatpush.bf16.msra.mxu0 0
    %2129 = vmatpush.bf16.msra.mxu0 0
    %2130 = vmatpush.bf16.msra.mxu0 0
    %2131 = vmatpush.bf16.msra.mxu0 0
    %2132 = vmatpush.bf16.msra.mxu0 0
    %2133 = vmatpush.bf16.msra.mxu0 %v2054
    %2134 = vmatmul.bf16.gmra.mxu0 %v2050
    %v2135 = vpop.f32.mrf.mxu0
    %v2136 = vadd.f32 %v2123, %v2135
    %v2137 = vpop.f32.mrf.mxu0
    %2138 = vdwg.mxu0
    %2139 = vmatpush.bf16.msra.mxu0 %v1643
    %2140 = vmatpush.bf16.msra.mxu0 %v1636
    %2141 = vmatpush.bf16.msra.mxu0 %v1629
    %2142 = vmatpush.bf16.msra.mxu0 %v1622
    %2143 = vmatpush.bf16.msra.mxu0 %v1615
    %2144 = vmatpush.bf16.msra.mxu0 %v1608
    %2145 = vmatpush.bf16.msra.mxu0 %v1601
    %2146 = vmatpush.bf16.msra.mxu0 %v1594
    %2147 = vmatmul.bf16.gmra.mxu0 %v613
    %v2148 = vpop.f32.mrf.mxu0
    %v2149 = vadd.f32 0.0, %v2148
    %v2150 = vpop.f32.mrf.mxu0
    %2151 = vdwg.mxu0
    %2152 = vmatpush.bf16.msra.mxu0 %v1699
    %2153 = vmatpush.bf16.msra.mxu0 %v1692
    %2154 = vmatpush.bf16.msra.mxu0 %v1685
    %2155 = vmatpush.bf16.msra.mxu0 %v1678
    %2156 = vmatpush.bf16.msra.mxu0 %v1671
    %2157 = vmatpush.bf16.msra.mxu0 %v1664
    %2158 = vmatpush.bf16.msra.mxu0 %v1657
    %2159 = vmatpush.bf16.msra.mxu0 %v1650
    %2160 = vmatmul.bf16.gmra.mxu0 %v614
    %v2161 = vpop.f32.mrf.mxu0
    %v2162 = vadd.f32 %v2149, %v2161
    %v2163 = vpop.f32.mrf.mxu0
    %2164 = vdwg.mxu0
    %2165 = vmatpush.bf16.msra.mxu0 %v1755
    %2166 = vmatpush.bf16.msra.mxu0 %v1748
    %2167 = vmatpush.bf16.msra.mxu0 %v1741
    %2168 = vmatpush.bf16.msra.mxu0 %v1734
    %2169 = vmatpush.bf16.msra.mxu0 %v1727
    %2170 = vmatpush.bf16.msra.mxu0 %v1720
    %2171 = vmatpush.bf16.msra.mxu0 %v1713
    %2172 = vmatpush.bf16.msra.mxu0 %v1706
    %2173 = vmatmul.bf16.gmra.mxu0 %v615
    %v2174 = vpop.f32.mrf.mxu0
    %v2175 = vadd.f32 %v2162, %v2174
    %v2176 = vpop.f32.mrf.mxu0
    %2177 = vdwg.mxu0
    %2178 = vmatpush.bf16.msra.mxu0 %v1811
    %2179 = vmatpush.bf16.msra.mxu0 %v1804
    %2180 = vmatpush.bf16.msra.mxu0 %v1797
    %2181 = vmatpush.bf16.msra.mxu0 %v1790
    %2182 = vmatpush.bf16.msra.mxu0 %v1783
    %2183 = vmatpush.bf16.msra.mxu0 %v1776
    %2184 = vmatpush.bf16.msra.mxu0 %v1769
    %2185 = vmatpush.bf16.msra.mxu0 %v1762
    %2186 = vmatmul.bf16.gmra.mxu0 %v616
    %v2187 = vpop.f32.mrf.mxu0
    %v2188 = vadd.f32 %v2175, %v2187
    %v2189 = vpop.f32.mrf.mxu0
    %2190 = vdwg.mxu0
    %2191 = vmatpush.bf16.msra.mxu0 0
    %2192 = vmatpush.bf16.msra.mxu0 0
    %2193 = vmatpush.bf16.msra.mxu0 0
    %2194 = vmatpush.bf16.msra.mxu0 0
    %2195 = vmatpush.bf16.msra.mxu0 0
    %2196 = vmatpush.bf16.msra.mxu0 0
    %2197 = vmatpush.bf16.msra.mxu0 0
    %2198 = vmatpush.bf16.msra.mxu0 %v2057
    %2199 = vmatmul.bf16.gmra.mxu0 %v2050
    %v2200 = vpop.f32.mrf.mxu0
    %v2201 = vadd.f32 %v2188, %v2200
    %v2202 = vpop.f32.mrf.mxu0
    %2203 = vdwg.mxu0
    %2204 = vmatpush.bf16.msra.mxu0 %v1644
    %2205 = vmatpush.bf16.msra.mxu0 %v1637
    %2206 = vmatpush.bf16.msra.mxu0 %v1630
    %2207 = vmatpush.bf16.msra.mxu0 %v1623
    %2208 = vmatpush.bf16.msra.mxu0 %v1616
    %2209 = vmatpush.bf16.msra.mxu0 %v1609
    %2210 = vmatpush.bf16.msra.mxu0 %v1602
    %2211 = vmatpush.bf16.msra.mxu0 %v1595
    %2212 = vmatmul.bf16.gmra.mxu0 %v613
    %v2213 = vpop.f32.mrf.mxu0
    %v2214 = vadd.f32 0.0, %v2213
    %v2215 = vpop.f32.mrf.mxu0
    %2216 = vdwg.mxu0
    %2217 = vmatpush.bf16.msra.mxu0 %v1700
    %2218 = vmatpush.bf16.msra.mxu0 %v1693
    %2219 = vmatpush.bf16.msra.mxu0 %v1686
    %2220 = vmatpush.bf16.msra.mxu0 %v1679
    %2221 = vmatpush.bf16.msra.mxu0 %v1672
    %2222 = vmatpush.bf16.msra.mxu0 %v1665
    %2223 = vmatpush.bf16.msra.mxu0 %v1658
    %2224 = vmatpush.bf16.msra.mxu0 %v1651
    %2225 = vmatmul.bf16.gmra.mxu0 %v614
    %v2226 = vpop.f32.mrf.mxu0
    %v2227 = vadd.f32 %v2214, %v2226
    %v2228 = vpop.f32.mrf.mxu0
    %2229 = vdwg.mxu0
    %2230 = vmatpush.bf16.msra.mxu0 %v1756
    %2231 = vmatpush.bf16.msra.mxu0 %v1749
    %2232 = vmatpush.bf16.msra.mxu0 %v1742
    %2233 = vmatpush.bf16.msra.mxu0 %v1735
    %2234 = vmatpush.bf16.msra.mxu0 %v1728
    %2235 = vmatpush.bf16.msra.mxu0 %v1721
    %2236 = vmatpush.bf16.msra.mxu0 %v1714
    %2237 = vmatpush.bf16.msra.mxu0 %v1707
    %2238 = vmatmul.bf16.gmra.mxu0 %v615
    %v2239 = vpop.f32.mrf.mxu0
    %v2240 = vadd.f32 %v2227, %v2239
    %v2241 = vpop.f32.mrf.mxu0
    %2242 = vdwg.mxu0
    %2243 = vmatpush.bf16.msra.mxu0 %v1812
    %2244 = vmatpush.bf16.msra.mxu0 %v1805
    %2245 = vmatpush.bf16.msra.mxu0 %v1798
    %2246 = vmatpush.bf16.msra.mxu0 %v1791
    %2247 = vmatpush.bf16.msra.mxu0 %v1784
    %2248 = vmatpush.bf16.msra.mxu0 %v1777
    %2249 = vmatpush.bf16.msra.mxu0 %v1770
    %2250 = vmatpush.bf16.msra.mxu0 %v1763
    %2251 = vmatmul.bf16.gmra.mxu0 %v616
    %v2252 = vpop.f32.mrf.mxu0
    %v2253 = vadd.f32 %v2240, %v2252
    %v2254 = vpop.f32.mrf.mxu0
    %2255 = vdwg.mxu0
    %2256 = vmatpush.bf16.msra.mxu0 0
    %2257 = vmatpush.bf16.msra.mxu0 0
    %2258 = vmatpush.bf16.msra.mxu0 0
    %2259 = vmatpush.bf16.msra.mxu0 0
    %2260 = vmatpush.bf16.msra.mxu0 0
    %2261 = vmatpush.bf16.msra.mxu0 0
    %2262 = vmatpush.bf16.msra.mxu0 0
    %2263 = vmatpush.bf16.msra.mxu0 %v2060
    %2264 = vmatmul.bf16.gmra.mxu0 %v2050
    %v2265 = vpop.f32.mrf.mxu0
    %v2266 = vadd.f32 %v2253, %v2265
    %v2267 = vpop.f32.mrf.mxu0
    %2268 = vdwg.mxu0
    %2269 = vmatpush.bf16.msra.mxu0 %v1645
    %2270 = vmatpush.bf16.msra.mxu0 %v1638
    %2271 = vmatpush.bf16.msra.mxu0 %v1631
    %2272 = vmatpush.bf16.msra.mxu0 %v1624
    %2273 = vmatpush.bf16.msra.mxu0 %v1617
    %2274 = vmatpush.bf16.msra.mxu0 %v1610
    %2275 = vmatpush.bf16.msra.mxu0 %v1603
    %2276 = vmatpush.bf16.msra.mxu0 %v1596
    %2277 = vmatmul.bf16.gmra.mxu0 %v613
    %v2278 = vpop.f32.mrf.mxu0
    %v2279 = vadd.f32 0.0, %v2278
    %v2280 = vpop.f32.mrf.mxu0
    %2281 = vdwg.mxu0
    %2282 = vmatpush.bf16.msra.mxu0 %v1701
    %2283 = vmatpush.bf16.msra.mxu0 %v1694
    %2284 = vmatpush.bf16.msra.mxu0 %v1687
    %2285 = vmatpush.bf16.msra.mxu0 %v1680
    %2286 = vmatpush.bf16.msra.mxu0 %v1673
    %2287 = vmatpush.bf16.msra.mxu0 %v1666
    %2288 = vmatpush.bf16.msra.mxu0 %v1659
    %2289 = vmatpush.bf16.msra.mxu0 %v1652
    %2290 = vmatmul.bf16.gmra.mxu0 %v614
    %v2291 = vpop.f32.mrf.mxu0
    %v2292 = vadd.f32 %v2279, %v2291
    %v2293 = vpop.f32.mrf.mxu0
    %2294 = vdwg.mxu0
    %2295 = vmatpush.bf16.msra.mxu0 %v1757
    %2296 = vmatpush.bf16.msra.mxu0 %v1750
    %2297 = vmatpush.bf16.msra.mxu0 %v1743
    %2298 = vmatpush.bf16.msra.mxu0 %v1736
    %2299 = vmatpush.bf16.msra.mxu0 %v1729
    %2300 = vmatpush.bf16.msra.mxu0 %v1722
    %2301 = vmatpush.bf16.msra.mxu0 %v1715
    %2302 = vmatpush.bf16.msra.mxu0 %v1708
    %2303 = vmatmul.bf16.gmra.mxu0 %v615
    %v2304 = vpop.f32.mrf.mxu0
    %v2305 = vadd.f32 %v2292, %v2304
    %v2306 = vpop.f32.mrf.mxu0
    %2307 = vdwg.mxu0
    %2308 = vmatpush.bf16.msra.mxu0 %v1813
    %2309 = vmatpush.bf16.msra.mxu0 %v1806
    %2310 = vmatpush.bf16.msra.mxu0 %v1799
    %2311 = vmatpush.bf16.msra.mxu0 %v1792
    %2312 = vmatpush.bf16.msra.mxu0 %v1785
    %2313 = vmatpush.bf16.msra.mxu0 %v1778
    %2314 = vmatpush.bf16.msra.mxu0 %v1771
    %2315 = vmatpush.bf16.msra.mxu0 %v1764
    %2316 = vmatmul.bf16.gmra.mxu0 %v616
    %v2317 = vpop.f32.mrf.mxu0
    %v2318 = vadd.f32 %v2305, %v2317
    %v2319 = vpop.f32.mrf.mxu0
    %2320 = vdwg.mxu0
    %2321 = vmatpush.bf16.msra.mxu0 0
    %2322 = vmatpush.bf16.msra.mxu0 0
    %2323 = vmatpush.bf16.msra.mxu0 0
    %2324 = vmatpush.bf16.msra.mxu0 0
    %2325 = vmatpush.bf16.msra.mxu0 0
    %2326 = vmatpush.bf16.msra.mxu0 0
    %2327 = vmatpush.bf16.msra.mxu0 0
    %2328 = vmatpush.bf16.msra.mxu0 %v2063
    %2329 = vmatmul.bf16.gmra.mxu0 %v2050
    %v2330 = vpop.f32.mrf.mxu0
    %v2331 = vadd.f32 %v2318, %v2330
    %v2332 = vpop.f32.mrf.mxu0
    %2333 = vdwg.mxu0
    %2334 = vmatpush.bf16.msra.mxu0 %v1646
    %2335 = vmatpush.bf16.msra.mxu0 %v1639
    %2336 = vmatpush.bf16.msra.mxu0 %v1632
    %2337 = vmatpush.bf16.msra.mxu0 %v1625
    %2338 = vmatpush.bf16.msra.mxu0 %v1618
    %2339 = vmatpush.bf16.msra.mxu0 %v1611
    %2340 = vmatpush.bf16.msra.mxu0 %v1604
    %2341 = vmatpush.bf16.msra.mxu0 %v1597
    %2342 = vmatmul.bf16.gmra.mxu0 %v613
    %v2343 = vpop.f32.mrf.mxu0
    %v2344 = vadd.f32 0.0, %v2343
    %v2345 = vpop.f32.mrf.mxu0
    %2346 = vdwg.mxu0
    %2347 = vmatpush.bf16.msra.mxu0 %v1702
    %2348 = vmatpush.bf16.msra.mxu0 %v1695
    %2349 = vmatpush.bf16.msra.mxu0 %v1688
    %2350 = vmatpush.bf16.msra.mxu0 %v1681
    %2351 = vmatpush.bf16.msra.mxu0 %v1674
    %2352 = vmatpush.bf16.msra.mxu0 %v1667
    %2353 = vmatpush.bf16.msra.mxu0 %v1660
    %2354 = vmatpush.bf16.msra.mxu0 %v1653
    %2355 = vmatmul.bf16.gmra.mxu0 %v614
    %v2356 = vpop.f32.mrf.mxu0
    %v2357 = vadd.f32 %v2344, %v2356
    %v2358 = vpop.f32.mrf.mxu0
    %2359 = vdwg.mxu0
    %2360 = vmatpush.bf16.msra.mxu0 %v1758
    %2361 = vmatpush.bf16.msra.mxu0 %v1751
    %2362 = vmatpush.bf16.msra.mxu0 %v1744
    %2363 = vmatpush.bf16.msra.mxu0 %v1737
    %2364 = vmatpush.bf16.msra.mxu0 %v1730
    %2365 = vmatpush.bf16.msra.mxu0 %v1723
    %2366 = vmatpush.bf16.msra.mxu0 %v1716
    %2367 = vmatpush.bf16.msra.mxu0 %v1709
    %2368 = vmatmul.bf16.gmra.mxu0 %v615
    %v2369 = vpop.f32.mrf.mxu0
    %v2370 = vadd.f32 %v2357, %v2369
    %v2371 = vpop.f32.mrf.mxu0
    %2372 = vdwg.mxu0
    %2373 = vmatpush.bf16.msra.mxu0 %v1814
    %2374 = vmatpush.bf16.msra.mxu0 %v1807
    %2375 = vmatpush.bf16.msra.mxu0 %v1800
    %2376 = vmatpush.bf16.msra.mxu0 %v1793
    %2377 = vmatpush.bf16.msra.mxu0 %v1786
    %2378 = vmatpush.bf16.msra.mxu0 %v1779
    %2379 = vmatpush.bf16.msra.mxu0 %v1772
    %2380 = vmatpush.bf16.msra.mxu0 %v1765
    %2381 = vmatmul.bf16.gmra.mxu0 %v616
    %v2382 = vpop.f32.mrf.mxu0
    %v2383 = vadd.f32 %v2370, %v2382
    %v2384 = vpop.f32.mrf.mxu0
    %2385 = vdwg.mxu0
    %2386 = vmatpush.bf16.msra.mxu0 0
    %2387 = vmatpush.bf16.msra.mxu0 0
    %2388 = vmatpush.bf16.msra.mxu0 0
    %2389 = vmatpush.bf16.msra.mxu0 0
    %2390 = vmatpush.bf16.msra.mxu0 0
    %2391 = vmatpush.bf16.msra.mxu0 0
    %2392 = vmatpush.bf16.msra.mxu0 0
    %2393 = vmatpush.bf16.msra.mxu0 %v2066
    %2394 = vmatmul.bf16.gmra.mxu0 %v2050
    %v2395 = vpop.f32.mrf.mxu0
    %v2396 = vadd.f32 %v2383, %v2395
    %v2397 = vpop.f32.mrf.mxu0
    %2398 = vdwg.mxu0
    %2399 = vmatpush.bf16.msra.mxu0 %v1647
    %2400 = vmatpush.bf16.msra.mxu0 %v1640
    %2401 = vmatpush.bf16.msra.mxu0 %v1633
    %2402 = vmatpush.bf16.msra.mxu0 %v1626
    %2403 = vmatpush.bf16.msra.mxu0 %v1619
    %2404 = vmatpush.bf16.msra.mxu0 %v1612
    %2405 = vmatpush.bf16.msra.mxu0 %v1605
    %2406 = vmatpush.bf16.msra.mxu0 %v1598
    %2407 = vmatmul.bf16.gmra.mxu0 %v613
    %v2408 = vpop.f32.mrf.mxu0
    %v2409 = vadd.f32 0.0, %v2408
    %v2410 = vpop.f32.mrf.mxu0
    %2411 = vdwg.mxu0
    %2412 = vmatpush.bf16.msra.mxu0 %v1703
    %2413 = vmatpush.bf16.msra.mxu0 %v1696
    %2414 = vmatpush.bf16.msra.mxu0 %v1689
    %2415 = vmatpush.bf16.msra.mxu0 %v1682
    %2416 = vmatpush.bf16.msra.mxu0 %v1675
    %2417 = vmatpush.bf16.msra.mxu0 %v1668
    %2418 = vmatpush.bf16.msra.mxu0 %v1661
    %2419 = vmatpush.bf16.msra.mxu0 %v1654
    %2420 = vmatmul.bf16.gmra.mxu0 %v614
    %v2421 = vpop.f32.mrf.mxu0
    %v2422 = vadd.f32 %v2409, %v2421
    %v2423 = vpop.f32.mrf.mxu0
    %2424 = vdwg.mxu0
    %2425 = vmatpush.bf16.msra.mxu0 %v1759
    %2426 = vmatpush.bf16.msra.mxu0 %v1752
    %2427 = vmatpush.bf16.msra.mxu0 %v1745
    %2428 = vmatpush.bf16.msra.mxu0 %v1738
    %2429 = vmatpush.bf16.msra.mxu0 %v1731
    %2430 = vmatpush.bf16.msra.mxu0 %v1724
    %2431 = vmatpush.bf16.msra.mxu0 %v1717
    %2432 = vmatpush.bf16.msra.mxu0 %v1710
    %2433 = vmatmul.bf16.gmra.mxu0 %v615
    %v2434 = vpop.f32.mrf.mxu0
    %v2435 = vadd.f32 %v2422, %v2434
    %v2436 = vpop.f32.mrf.mxu0
    %2437 = vdwg.mxu0
    %2438 = vmatpush.bf16.msra.mxu0 %v1815
    %2439 = vmatpush.bf16.msra.mxu0 %v1808
    %2440 = vmatpush.bf16.msra.mxu0 %v1801
    %2441 = vmatpush.bf16.msra.mxu0 %v1794
    %2442 = vmatpush.bf16.msra.mxu0 %v1787
    %2443 = vmatpush.bf16.msra.mxu0 %v1780
    %2444 = vmatpush.bf16.msra.mxu0 %v1773
    %2445 = vmatpush.bf16.msra.mxu0 %v1766
    %2446 = vmatmul.bf16.gmra.mxu0 %v616
    %v2447 = vpop.f32.mrf.mxu0
    %v2448 = vadd.f32 %v2435, %v2447
    %v2449 = vpop.f32.mrf.mxu0
    %2450 = vdwg.mxu0
    %2451 = vmatpush.bf16.msra.mxu0 0
    %2452 = vmatpush.bf16.msra.mxu0 0
    %2453 = vmatpush.bf16.msra.mxu0 0
    %2454 = vmatpush.bf16.msra.mxu0 0
    %2455 = vmatpush.bf16.msra.mxu0 0
    %2456 = vmatpush.bf16.msra.mxu0 0
    %2457 = vmatpush.bf16.msra.mxu0 0
    %2458 = vmatpush.bf16.msra.mxu0 %v2069
    %2459 = vmatmul.bf16.gmra.mxu0 %v2050
    %v2460 = vpop.f32.mrf.mxu0
    %v2461 = vadd.f32 %v2448, %v2460
    %v2462 = vpop.f32.mrf.mxu0
    %2463 = vdwg.mxu0
    %2464 = vmatpush.bf16.msra.mxu0 %v1648
    %2465 = vmatpush.bf16.msra.mxu0 %v1641
    %2466 = vmatpush.bf16.msra.mxu0 %v1634
    %2467 = vmatpush.bf16.msra.mxu0 %v1627
    %2468 = vmatpush.bf16.msra.mxu0 %v1620
    %2469 = vmatpush.bf16.msra.mxu0 %v1613
    %2470 = vmatpush.bf16.msra.mxu0 %v1606
    %2471 = vmatpush.bf16.msra.mxu0 %v1599
    %2472 = vmatmul.bf16.gmra.mxu0 %v613
    %v2473 = vpop.f32.mrf.mxu0
    %v2474 = vadd.f32 0.0, %v2473
    %v2475 = vpop.f32.mrf.mxu0
    %2476 = vdwg.mxu0
    %2477 = vmatpush.bf16.msra.mxu0 %v1704
    %2478 = vmatpush.bf16.msra.mxu0 %v1697
    %2479 = vmatpush.bf16.msra.mxu0 %v1690
    %2480 = vmatpush.bf16.msra.mxu0 %v1683
    %2481 = vmatpush.bf16.msra.mxu0 %v1676
    %2482 = vmatpush.bf16.msra.mxu0 %v1669
    %2483 = vmatpush.bf16.msra.mxu0 %v1662
    %2484 = vmatpush.bf16.msra.mxu0 %v1655
    %2485 = vmatmul.bf16.gmra.mxu0 %v614
    %v2486 = vpop.f32.mrf.mxu0
    %v2487 = vadd.f32 %v2474, %v2486
    %v2488 = vpop.f32.mrf.mxu0
    %2489 = vdwg.mxu0
    %2490 = vmatpush.bf16.msra.mxu0 %v1760
    %2491 = vmatpush.bf16.msra.mxu0 %v1753
    %2492 = vmatpush.bf16.msra.mxu0 %v1746
    %2493 = vmatpush.bf16.msra.mxu0 %v1739
    %2494 = vmatpush.bf16.msra.mxu0 %v1732
    %2495 = vmatpush.bf16.msra.mxu0 %v1725
    %2496 = vmatpush.bf16.msra.mxu0 %v1718
    %2497 = vmatpush.bf16.msra.mxu0 %v1711
    %2498 = vmatmul.bf16.gmra.mxu0 %v615
    %v2499 = vpop.f32.mrf.mxu0
    %v2500 = vadd.f32 %v2487, %v2499
    %v2501 = vpop.f32.mrf.mxu0
    %2502 = vdwg.mxu0
    %2503 = vmatpush.bf16.msra.mxu0 %v1816
    %2504 = vmatpush.bf16.msra.mxu0 %v1809
    %2505 = vmatpush.bf16.msra.mxu0 %v1802
    %2506 = vmatpush.bf16.msra.mxu0 %v1795
    %2507 = vmatpush.bf16.msra.mxu0 %v1788
    %2508 = vmatpush.bf16.msra.mxu0 %v1781
    %2509 = vmatpush.bf16.msra.mxu0 %v1774
    %2510 = vmatpush.bf16.msra.mxu0 %v1767
    %2511 = vmatmul.bf16.gmra.mxu0 %v616
    %v2512 = vpop.f32.mrf.mxu0
    %v2513 = vadd.f32 %v2500, %v2512
    %v2514 = vpop.f32.mrf.mxu0
    %2515 = vdwg.mxu0
    %2516 = vmatpush.bf16.msra.mxu0 0
    %2517 = vmatpush.bf16.msra.mxu0 0
    %2518 = vmatpush.bf16.msra.mxu0 0
    %2519 = vmatpush.bf16.msra.mxu0 0
    %2520 = vmatpush.bf16.msra.mxu0 0
    %2521 = vmatpush.bf16.msra.mxu0 0
    %2522 = vmatpush.bf16.msra.mxu0 0
    %2523 = vmatpush.bf16.msra.mxu0 %v2072
    %2524 = vmatmul.bf16.gmra.mxu0 %v2050
    %v2525 = vpop.f32.mrf.mxu0
    %v2526 = vadd.f32 %v2513, %v2525
    %v2527 = vpop.f32.mrf.mxu0
    %2528 = vdwg.mxu0
    %v2529 = vld [vmem:[%s4] sm:$0xff]
    %v2530 = vld [vmem:[%s4 + $0x8] sm:$0xff]
    %v2531 = vld [vmem:[%s4 + $0x10] sm:$0xff]
    %v2532 = vld [vmem:[%s4 + $0x18] sm:$0xff]
    %v2533 = vld [vmem:[%s4 + $0x20] sm:$0xff]
    %v2534 = vld [vmem:[%s4 + $0x28] sm:$0xff]
    %v2535 = vld [vmem:[%s4 + $0x30] sm:$0xff]
    %v2536 = vld [vmem:[%s4 + $0x38] sm:$0xff]
    %v2537 = vld [vmem:[%s4 + $0x40] sm:$0x1]
    %v2539 = vsel %vm599, %v551, 0
    %vm2541 = vcmask 1040384
    %v2543 = vsel %vm2541, %v2537, 0
    %2545 = vmatpush.msra.mxu0 0.0
    %2546 = vmatpush.msra.mxu0 0.0
    %2547 = vmatpush.msra.mxu0 0.0
    %2548 = vmatpush.msra.mxu0 0.0
    %2549 = vmatpush.msra.mxu0 0.0
    %2550 = vmatpush.msra.mxu0 0.0
    %2551 = vmatpush.msra.mxu0 0.0
    %2552 = vmatpush.msra.mxu0 %v2543
    %2553 = vmatpush.msra.mxu0 %v2536
    %2554 = vmatpush.msra.mxu0 %v2535
    %2555 = vmatpush.msra.mxu0 %v2534
    %2556 = vmatpush.msra.mxu0 %v2533
    %2557 = vmatpush.msra.mxu0 %v2532
    %2558 = vmatpush.msra.mxu0 %v2531
    %2559 = vmatpush.msra.mxu0 %v2530
    %2560 = vmatpush.msra.mxu0 %v2529
    %2561 = vmatmul.f32.gmra.mxu0 %v2539
    %v2562 = vpop.f32.mrf.mxu0
    %v2563 = vadd.f32 0.0, %v2562
    %2564 = vdwg.mxu0
    %v2565 = vld [vmem:[%s0] sm:$0xff]
    %v2566 = vld [vmem:[%s0 + $0x8] sm:$0x3f]
    %v2567 = vperm.slane %v2563, 0
    %2570 = vst [vmem:[#allocation1] ss:$4 sm:$0xff] %v2565
    %s2571 = scalar_lea.vmem [#allocation1], 32
    %2572 = vst [vmem:[%s2571] ss:$4 sm:$0xff] %v2566
    %v2573 = vld.sshfl [vmem:[#allocation1] sm:$0xff pattern:$0x73625140]
    %v2574 = vld.sshfl [vmem:[#allocation1 + $0x8] sm:$0xff pattern:$0x73625140]
    %v2575 = vld.sshfl [vmem:[#allocation1 + $0x10] sm:$0xff pattern:$0x73625140]
    %v2576 = vld.sshfl [vmem:[#allocation1 + $0x18] sm:$0xff pattern:$0x73625140]
    %v2577 = vld.sshfl [vmem:[#allocation1 + $0x20] sm:$0xff pattern:$0x73625140]
    %v2578 = vld.sshfl [vmem:[#allocation1 + $0x28] sm:$0xff pattern:$0x73625140]
    %v2579 = vld.sshfl [vmem:[#allocation1 + $0x30] sm:$0xff pattern:$0x73625140]
    %v2586 = vsel %vm454, %v2579, 0
    %v2589 = vsel %vm454, %v2526, 0
    %2591 = vmatpush.xpose.msra.mxu0 0.0
    %2592 = vmatpush.xpose.msra.mxu0 0.0
    %2593 = vmatpush.xpose.msra.mxu0 0.0
    %2594 = vmatpush.xpose.msra.mxu0 0.0
    %2595 = vmatpush.xpose.msra.mxu0 0.0
    %2596 = vmatpush.xpose.msra.mxu0 0.0
    %2597 = vmatpush.xpose.msra.mxu0 0.0
    %2598 = vmatpush.xpose.msra.mxu0 0.0
    %2599 = vmatpush.xpose.msra.mxu0 0.0
    %2600 = vmatpush.xpose.msra.mxu0 0.0
    %2601 = vmatpush.xpose.msra.mxu0 0.0
    %2602 = vmatpush.xpose.msra.mxu0 0.0
    %2603 = vmatpush.xpose.msra.mxu0 0.0
    %2604 = vmatpush.xpose.msra.mxu0 0.0
    %2605 = vmatpush.xpose.msra.mxu0 0.0
    %2606 = vmatpush.xpose.msra.mxu0 %v2136
    %2607 = vmatmul.f32.gmra.mxu0 %v2573
    %v2608 = vpop.f32.mrf.mxu0
    %v2609 = vadd.f32 %v2567, %v2608
    %2610 = vdwg.mxu0
    %2611 = vmatpush.xpose.msra.mxu0 0.0
    %2612 = vmatpush.xpose.msra.mxu0 0.0
    %2613 = vmatpush.xpose.msra.mxu0 0.0
    %2614 = vmatpush.xpose.msra.mxu0 0.0
    %2615 = vmatpush.xpose.msra.mxu0 0.0
    %2616 = vmatpush.xpose.msra.mxu0 0.0
    %2617 = vmatpush.xpose.msra.mxu0 0.0
    %2618 = vmatpush.xpose.msra.mxu0 0.0
    %2619 = vmatpush.xpose.msra.mxu0 0.0
    %2620 = vmatpush.xpose.msra.mxu0 0.0
    %2621 = vmatpush.xpose.msra.mxu0 0.0
    %2622 = vmatpush.xpose.msra.mxu0 0.0
    %2623 = vmatpush.xpose.msra.mxu0 0.0
    %2624 = vmatpush.xpose.msra.mxu0 0.0
    %2625 = vmatpush.xpose.msra.mxu0 0.0
    %2626 = vmatpush.xpose.msra.mxu0 %v2201
    %2627 = vmatmul.f32.gmra.mxu0 %v2574
    %v2628 = vpop.f32.mrf.mxu0
    %v2629 = vadd.f32 %v2609, %v2628
    %2630 = vdwg.mxu0
    %2631 = vmatpush.xpose.msra.mxu0 0.0
    %2632 = vmatpush.xpose.msra.mxu0 0.0
    %2633 = vmatpush.xpose.msra.mxu0 0.0
    %2634 = vmatpush.xpose.msra.mxu0 0.0
    %2635 = vmatpush.xpose.msra.mxu0 0.0
    %2636 = vmatpush.xpose.msra.mxu0 0.0
    %2637 = vmatpush.xpose.msra.mxu0 0.0
    %2638 = vmatpush.xpose.msra.mxu0 0.0
    %2639 = vmatpush.xpose.msra.mxu0 0.0
    %2640 = vmatpush.xpose.msra.mxu0 0.0
    %2641 = vmatpush.xpose.msra.mxu0 0.0
    %2642 = vmatpush.xpose.msra.mxu0 0.0
    %2643 = vmatpush.xpose.msra.mxu0 0.0
    %2644 = vmatpush.xpose.msra.mxu0 0.0
    %2645 = vmatpush.xpose.msra.mxu0 0.0
    %2646 = vmatpush.xpose.msra.mxu0 %v2266
    %2647 = vmatmul.f32.gmra.mxu0 %v2575
    %v2648 = vpop.f32.mrf.mxu0
    %v2649 = vadd.f32 %v2629, %v2648
    %2650 = vdwg.mxu0
    %2651 = vmatpush.xpose.msra.mxu0 0.0
    %2652 = vmatpush.xpose.msra.mxu0 0.0
    %2653 = vmatpush.xpose.msra.mxu0 0.0
    %2654 = vmatpush.xpose.msra.mxu0 0.0
    %2655 = vmatpush.xpose.msra.mxu0 0.0
    %2656 = vmatpush.xpose.msra.mxu0 0.0
    %2657 = vmatpush.xpose.msra.mxu0 0.0
    %2658 = vmatpush.xpose.msra.mxu0 0.0
    %2659 = vmatpush.xpose.msra.mxu0 0.0
    %2660 = vmatpush.xpose.msra.mxu0 0.0
    %2661 = vmatpush.xpose.msra.mxu0 0.0
    %2662 = vmatpush.xpose.msra.mxu0 0.0
    %2663 = vmatpush.xpose.msra.mxu0 0.0
    %2664 = vmatpush.xpose.msra.mxu0 0.0
    %2665 = vmatpush.xpose.msra.mxu0 0.0
    %2666 = vmatpush.xpose.msra.mxu0 %v2331
    %2667 = vmatmul.f32.gmra.mxu0 %v2576
    %v2668 = vpop.f32.mrf.mxu0
    %v2669 = vadd.f32 %v2649, %v2668
    %2670 = vdwg.mxu0
    %2671 = vmatpush.xpose.msra.mxu0 0.0
    %2672 = vmatpush.xpose.msra.mxu0 0.0
    %2673 = vmatpush.xpose.msra.mxu0 0.0
    %2674 = vmatpush.xpose.msra.mxu0 0.0
    %2675 = vmatpush.xpose.msra.mxu0 0.0
    %2676 = vmatpush.xpose.msra.mxu0 0.0
    %2677 = vmatpush.xpose.msra.mxu0 0.0
    %2678 = vmatpush.xpose.msra.mxu0 0.0
    %2679 = vmatpush.xpose.msra.mxu0 0.0
    %2680 = vmatpush.xpose.msra.mxu0 0.0
    %2681 = vmatpush.xpose.msra.mxu0 0.0
    %2682 = vmatpush.xpose.msra.mxu0 0.0
    %2683 = vmatpush.xpose.msra.mxu0 0.0
    %2684 = vmatpush.xpose.msra.mxu0 0.0
    %2685 = vmatpush.xpose.msra.mxu0 0.0
    %2686 = vmatpush.xpose.msra.mxu0 %v2396
    %2687 = vmatmul.f32.gmra.mxu0 %v2577
    %v2688 = vpop.f32.mrf.mxu0
    %v2689 = vadd.f32 %v2669, %v2688
    %2690 = vdwg.mxu0
    %2691 = vmatpush.xpose.msra.mxu0 0.0
    %2692 = vmatpush.xpose.msra.mxu0 0.0
    %2693 = vmatpush.xpose.msra.mxu0 0.0
    %2694 = vmatpush.xpose.msra.mxu0 0.0
    %2695 = vmatpush.xpose.msra.mxu0 0.0
    %2696 = vmatpush.xpose.msra.mxu0 0.0
    %2697 = vmatpush.xpose.msra.mxu0 0.0
    %2698 = vmatpush.xpose.msra.mxu0 0.0
    %2699 = vmatpush.xpose.msra.mxu0 0.0
    %2700 = vmatpush.xpose.msra.mxu0 0.0
    %2701 = vmatpush.xpose.msra.mxu0 0.0
    %2702 = vmatpush.xpose.msra.mxu0 0.0
    %2703 = vmatpush.xpose.msra.mxu0 0.0
    %2704 = vmatpush.xpose.msra.mxu0 0.0
    %2705 = vmatpush.xpose.msra.mxu0 0.0
    %2706 = vmatpush.xpose.msra.mxu0 %v2461
    %2707 = vmatmul.f32.gmra.mxu0 %v2578
    %v2708 = vpop.f32.mrf.mxu0
    %v2709 = vadd.f32 %v2689, %v2708
    %2710 = vdwg.mxu0
    %2711 = vmatpush.xpose.msra.mxu0 0.0
    %2712 = vmatpush.xpose.msra.mxu0 0.0
    %2713 = vmatpush.xpose.msra.mxu0 0.0
    %2714 = vmatpush.xpose.msra.mxu0 0.0
    %2715 = vmatpush.xpose.msra.mxu0 0.0
    %2716 = vmatpush.xpose.msra.mxu0 0.0
    %2717 = vmatpush.xpose.msra.mxu0 0.0
    %2718 = vmatpush.xpose.msra.mxu0 0.0
    %2719 = vmatpush.xpose.msra.mxu0 0.0
    %2720 = vmatpush.xpose.msra.mxu0 0.0
    %2721 = vmatpush.xpose.msra.mxu0 0.0
    %2722 = vmatpush.xpose.msra.mxu0 0.0
    %2723 = vmatpush.xpose.msra.mxu0 0.0
    %2724 = vmatpush.xpose.msra.mxu0 0.0
    %2725 = vmatpush.xpose.msra.mxu0 0.0
    %2726 = vmatpush.xpose.msra.mxu0 %v2589
    %2727 = vmatmul.f32.gmra.mxu0 %v2586
    %v2728 = vpop.f32.mrf.mxu0
    %v2729 = vadd.f32 %v2709, %v2728
    %2730 = vdwg.mxu0
    %vm2731 = vcmask 58368
    %2732 = vst.msk [vmem:[#allocation5] sm:$0x3] %vm2731, %v2729
    // Predicated region
    $region26: #{tpu_custom_call.1} parent=1 // pred_check
      _
    $region27: #{tpu_custom_call.1} parent=1 // pred_check_branch
      %2734 = sbr.rel (0) target = $region29
    $region28: #{tpu_custom_call.1} parent=1 // pred_region
      %2736 = vsyncadd [#allocation4], 0
      %s2738 = sshll.u32 [#allocation5], 4
      %s2739 = int_to_ptr.vmem [resolvable:$true] %s2738
      %s2740 = sshll.u32 %s5, 4
      %s2741 = int_to_ptr.hbm [resolvable:$true] %s2740
      %2743 = dma.vmem_to_hbm [thread:$0]  %s2739, 32, %s2741, [#allocation4]
    $region29: #{tpu_custom_call.1} parent=1 // pred_fallthru
      _
    // Predicated region
    $region30: #{tpu_custom_call.1} parent=1 // pred_check
      _
    $region31: #{tpu_custom_call.1} parent=1 // pred_check_branch
      %2745 = sbr.rel (0) target = $region33
    $region32: #{tpu_custom_call.1} parent=1 // pred_region
      %2747 = dma.done [#allocation4], 32
    $region33: #{tpu_custom_call.1} parent=1 // pred_fallthru
      _
    %2748 = vsyncpa [#allocation3], 1
    %2749 = vsyncpa [#allocation4], 1

</llo_original>
